<compile_context>
chip_gen: v7x
topology: tpu7x:2x2x1
jax: 0.10.0
libtpu: 0.0.40
codegen_flags: <defaults>
</compile_context>

<pallas_src>
import functools
import math

import jax
import jax.numpy as jnp
from jax.experimental import pallas as pl
from jax.experimental.pallas import tpu as pltpu


def _rmsnorm(x, w, eps):
    # x: (rows, H) f32, w: (1, H) f32
    ms = jnp.mean(x * x, axis=-1, keepdims=True)
    return (x * jax.lax.rsqrt(ms + eps)) * w


def minimind_block_kernel(xt_ref, xf_ref, n1_ref, n2_ref,
                          wq_ref, wkv_ref, wo_ref, wgu_ref, wd_ref,
                          o_ref, *, n_heads, n_kv_heads, head_dim, inter, eps):
    T = xt_ref.shape[1]            # q-tile rows
    S = xf_ref.shape[1]            # full sequence length
    D = head_dim
    n_rep = n_heads // n_kv_heads

    q_start = pl.multiple_of(pl.program_id(1) * T, T)

    n1 = n1_ref[...].astype(jnp.float32)             # (1, H)
    n2 = n2_ref[...].astype(jnp.float32)             # (1, H)

    x_tile = xt_ref[0].astype(jnp.float32)           # (T, H) residual / Q rows
    x_full = xf_ref[0].astype(jnp.float32)           # (S, H) K/V rows

    # --- input RMSNorm (f32 VPU math); matmul operands in bf16 ---
    xn_tile = _rmsnorm(x_tile, n1, eps).astype(jnp.bfloat16)
    xn_full = _rmsnorm(x_full, n1, eps).astype(jnp.bfloat16)

    # --- projections: Q on the q-tile, fused K|V on the full sequence (one wide MXU pass each) ---
    q2 = jnp.dot(xn_tile, wq_ref[...], preferred_element_type=jnp.float32)    # (T, nH*D)
    kv2 = jnp.dot(xn_full, wkv_ref[...], preferred_element_type=jnp.float32)  # (S, 2*nKV*D)

    # fold attention scale into Q (O(T*H) multiply instead of O(nH*T*S))
    q2 = q2 * (1.0 / math.sqrt(D))

    # head-major 3-D layout for batched per-head MXU einsums
    q3 = jnp.swapaxes(q2.reshape(T, n_heads, D), 0, 1).astype(jnp.bfloat16)   # (nH, T, D)
    kv3 = jnp.swapaxes(kv2.reshape(S, 2 * n_kv_heads, D), 0, 1)               # (2*nKV, S, D)
    k3 = kv3[:n_kv_heads].astype(jnp.bfloat16)                                # (nKV, S, D)
    v3 = kv3[n_kv_heads:].astype(jnp.bfloat16)                                # (nKV, S, D)
    # GQA repeat_interleave: query head h uses kv head h // n_rep (leading-dim broadcast, cheap)
    k3 = jnp.broadcast_to(k3[:, None], (n_kv_heads, n_rep, S, D)).reshape(n_heads, S, D)
    v3 = jnp.broadcast_to(v3[:, None], (n_kv_heads, n_rep, S, D)).reshape(n_heads, S, D)

    # --- causal attention; scores bounded to (nH, T, S); softmax in f32 ---
    s = jnp.einsum('hqd,hkd->hqk', q3, k3, preferred_element_type=jnp.float32)
    q_pos = q_start + jax.lax.broadcasted_iota(jnp.int32, (T, S), 0)
    k_pos = jax.lax.broadcasted_iota(jnp.int32, (T, S), 1)
    s = jnp.where((q_pos >= k_pos)[None], s, -jnp.inf)
    s = s - jnp.max(s, axis=-1, keepdims=True)
    p = jnp.exp(s)
    p = p * pl.reciprocal(jnp.sum(p, axis=-1, keepdims=True), approx=True)
    o3 = jnp.einsum('hqk,hkd->hqd', p.astype(jnp.bfloat16), v3,
                    preferred_element_type=jnp.float32)                       # (nH, T, D)
    attn = jnp.swapaxes(o3, 0, 1).reshape(T, n_heads * D).astype(jnp.bfloat16)

    h1 = x_tile + jnp.dot(attn, wo_ref[...], preferred_element_type=jnp.float32)   # (T, H)

    # --- post-attention RMSNorm + SwiGLU MLP (fused gate|up matmul) ---
    hn = _rmsnorm(h1, n2, eps).astype(jnp.bfloat16)
    gu = jnp.dot(hn, wgu_ref[...], preferred_element_type=jnp.float32)        # (T, 2I)
    g = gu[:, :inter]
    u = gu[:, inter:]
    act = (g * jax.nn.sigmoid(g)) * u                                         # SiLU(g) * u, f32
    mlp = jnp.dot(act.astype(jnp.bfloat16), wd_ref[...],
                  preferred_element_type=jnp.float32)                         # (T, H)

    o_ref[0] = (h1 + mlp).astype(o_ref.dtype)


def minimind_block(x, params, *, n_heads, n_kv_heads, eps=1e-5, q_tile=None):
    """x: (B, S, H). params: dict of weights pre-transposed to (in_features, out_features)."""
    B, S, H = x.shape
    assert H % n_heads == 0 and n_heads % n_kv_heads == 0
    D = H // n_heads
    I = params["w_gate"].shape[1]
    if q_tile is None:
        q_tile = min(S, 128)
    assert S % q_tile == 0 and q_tile % 8 == 0

    # Fuse + pre-cast weights once at the call site (halves weight DMA/VMEM residency; the kernel
    # accumulates in f32). K|V fused; gate|up fused.
    wq = params["wq"].astype(jnp.bfloat16)
    wkv = jnp.concatenate([params["wk"], params["wv"]], axis=1).astype(jnp.bfloat16)
    wo = params["wo"].astype(jnp.bfloat16)
    wgu = jnp.concatenate([params["w_gate"], params["w_up"]], axis=1).astype(jnp.bfloat16)
    wd = params["w_down"].astype(jnp.bfloat16)
    n1 = params["rms1"].reshape(1, H).astype(jnp.float32)
    n2 = params["rms2"].reshape(1, H).astype(jnp.float32)

    kernel = functools.partial(
        minimind_block_kernel,
        n_heads=n_heads, n_kv_heads=n_kv_heads, head_dim=D, inter=I, eps=eps)

    def wspec(shape):
        return pl.BlockSpec(shape, lambda b, t: (0, 0))

    grid_spec = pltpu.PrefetchScalarGridSpec(
        num_scalar_prefetch=0,
        grid=(B, S // q_tile),
        in_specs=[
            pl.BlockSpec((1, q_tile, H), lambda b, t: (b, t, 0)),   # x q-tile (residual + Q)
            pl.BlockSpec((1, S, H), lambda b, t: (b, 0, 0)),        # x full sequence (K/V)
            wspec((1, H)),                                          # rms1 weight
            wspec((1, H)),                                          # rms2 weight
            wspec((H, n_heads * D)),                                # wq
            wspec((H, 2 * n_kv_heads * D)),                         # wk|wv fused
            wspec((n_heads * D, H)),                                # wo
            wspec((H, 2 * I)),                                      # w_gate|w_up fused
            wspec((I, H)),                                          # w_down
        ],
        out_specs=pl.BlockSpec((1, q_tile, H), lambda b, t: (b, t, 0)),
    )

    return pl.pallas_call(
        kernel,
        out_shape=jax.ShapeDtypeStruct((B, S, H), x.dtype),
        grid_spec=grid_spec,
        compiler_params=pltpu.CompilerParams(
            dimension_semantics=("parallel", "parallel"),
            vmem_limit_bytes=48 * 1024 * 1024),
    )(x, x, n1, n2, wq, wkv, wo, wgu, wd)


# ----------------------------- pure-JAX (f32) reference ------------------------------
def _ref_rmsnorm(x, w, eps):
    ms = jnp.mean(x.astype(jnp.float32) ** 2, axis=-1, keepdims=True)
    return w * (x * jax.lax.rsqrt(ms + eps))


def minimind_block_ref(x, params, *, n_heads, n_kv_heads, eps=1e-5):
    B, S, H = x.shape
    D = H // n_heads
    n_rep = n_heads // n_kv_heads
    xn = _ref_rmsnorm(x, params["rms1"], eps)
    q = xn @ params["wq"]
    k = xn @ params["wk"]
    v = xn @ params["wv"]
    q = q.reshape(B, S, n_heads, D).transpose(0, 2, 1, 3)
    k = k.reshape(B, S, n_kv_heads, D)
    v = v.reshape(B, S, n_kv_heads, D)
    k = jnp.repeat(k, n_rep, axis=2).transpose(0, 2, 1, 3)
    v = jnp.repeat(v, n_rep, axis=2).transpose(0, 2, 1, 3)
    s = jnp.einsum("bhqd,bhkd->bhqk", q, k) / math.sqrt(D)
    mask = jnp.tril(jnp.ones((S, S), bool))
    s = jnp.where(mask[None, None], s, -jnp.inf)
    p = jax.nn.softmax(s, axis=-1)
    o = jnp.einsum("bhqk,bhkd->bhqd", p, v).transpose(0, 2, 1, 3).reshape(B, S, H)
    h1 = x + o @ params["wo"]
    hn = _ref_rmsnorm(h1, params["rms2"], eps)
    g = hn @ params["w_gate"]
    u = hn @ params["w_up"]
    return h1 + (jax.nn.silu(g) * u) @ params["w_down"]


if __name__ == "__main__":
    # Small config consistent with the module: hidden_size=128, num_attention_heads=4,
    # num_key_value_heads=2 (head_dim=32), intermediate_size=64*ceil(int(128*8/3)/64)=384,
    # seq=16, batch=2.
    B, S, H = 2, 16, 128
    n_heads, n_kv_heads = 4, 2
    D = H // n_heads
    I = 64 * ((int(H * 8 / 3) + 63) // 64)   # 384
    eps = 1e-5

    key = jax.random.PRNGKey(0)
    ks = jax.random.split(key, 9)
    scale = 0.02
    params = {
        "rms1": jnp.ones((H,), jnp.float32),
        "rms2": jnp.ones((H,), jnp.float32),
        "wq": scale * jax.random.normal(ks[0], (H, n_heads * D), jnp.float32),
        "wk": scale * jax.random.normal(ks[1], (H, n_kv_heads * D), jnp.float32),
        "wv": scale * jax.random.normal(ks[2], (H, n_kv_heads * D), jnp.float32),
        "wo": scale * jax.random.normal(ks[3], (n_heads * D, H), jnp.float32),
        "w_gate": scale * jax.random.normal(ks[4], (H, I), jnp.float32),
        "w_up": scale * jax.random.normal(ks[5], (H, I), jnp.float32),
        "w_down": scale * jax.random.normal(ks[6], (I, H), jnp.float32),
    }
    x = jax.random.normal(ks[7], (B, S, H), jnp.float32)

    out = minimind_block(x, params, n_heads=n_heads, n_kv_heads=n_kv_heads, eps=eps)
    out = jax.block_until_ready(out)

    ref = minimind_block_ref(x, params, n_heads=n_heads, n_kv_heads=n_kv_heads, eps=eps)
    assert out.shape == (B, S, H)
    # Tolerance 2e-3: kernel matmuls run in bf16 (f32 accumulation) vs the f32 reference.
    assert jnp.allclose(out, ref, rtol=2e-3, atol=2e-3), "mismatch vs JAX reference"

    print("KERNEL_OK")
</pallas_src>

<mosaic_0001>
module attributes {stable_mosaic.version = 11 : i64} {
  func.func @minimind_block_kernel(%arg0: i32, %arg1: i32, %arg2: memref<1x16x128xf32, #tpu.memory_space<vmem>>, %arg3: memref<1x16x128xf32, #tpu.memory_space<vmem>>, %arg4: memref<1x128xf32, #tpu.memory_space<vmem>>, %arg5: memref<1x128xf32, #tpu.memory_space<vmem>>, %arg6: memref<128x128xbf16, #tpu.memory_space<vmem>>, %arg7: memref<128x128xbf16, #tpu.memory_space<vmem>>, %arg8: memref<128x128xbf16, #tpu.memory_space<vmem>>, %arg9: memref<128x768xbf16, #tpu.memory_space<vmem>>, %arg10: memref<384x128xbf16, #tpu.memory_space<vmem>>, %arg11: memref<1x16x128xf32, #tpu.memory_space<vmem>>) attributes {dimension_semantics = [#tpu.dimension_semantics<parallel>, #tpu.dimension_semantics<parallel>], iteration_bounds = array<i64: 2, 1>, scalar_prefetch = 0 : i64, scratch_operands = 0 : i64, tpu.core_type = #tpu.core_type<tc>, window_params = [{transform_indices = @transform_0, window_bounds = array<i64: 1, 16, 128>}, {transform_indices = @transform_1, window_bounds = array<i64: 1, 16, 128>}, {pipeline_mode = #tpu.pipeline_mode<synchronous>, transform_indices = @transform_2, window_bounds = array<i64: 1, 128>}, {pipeline_mode = #tpu.pipeline_mode<synchronous>, transform_indices = @transform_3, window_bounds = array<i64: 1, 128>}, {pipeline_mode = #tpu.pipeline_mode<synchronous>, transform_indices = @transform_4, window_bounds = array<i64: 128, 128>}, {pipeline_mode = #tpu.pipeline_mode<synchronous>, transform_indices = @transform_5, window_bounds = array<i64: 128, 128>}, {pipeline_mode = #tpu.pipeline_mode<synchronous>, transform_indices = @transform_6, window_bounds = array<i64: 128, 128>}, {pipeline_mode = #tpu.pipeline_mode<synchronous>, transform_indices = @transform_7, window_bounds = array<i64: 128, 768>}, {pipeline_mode = #tpu.pipeline_mode<synchronous>, transform_indices = @transform_8, window_bounds = array<i64: 384, 128>}, {transform_indices = @transform_9, window_bounds = array<i64: 1, 16, 128>}]} {
    %c16_i32 = arith.constant 16 : i32
    %0 = arith.muli %arg1, %c16_i32 : i32
    %1 = tpu.assume_multiple %0, 16 : i32
    %c0 = arith.constant 0 : index
    %c0_0 = arith.constant 0 : index
    %2 = vector.load %arg4[%c0, %c0_0] : memref<1x128xf32, #tpu.memory_space<vmem>>, vector<1x128xf32>
    %c0_1 = arith.constant 0 : index
    %c0_2 = arith.constant 0 : index
    %3 = vector.load %arg5[%c0_1, %c0_2] : memref<1x128xf32, #tpu.memory_space<vmem>>, vector<1x128xf32>
    %c0_3 = arith.constant 0 : index
    %c0_4 = arith.constant 0 : index
    %c0_5 = arith.constant 0 : index
    %4 = vector.load %arg2[%c0_3, %c0_4, %c0_5] : memref<1x16x128xf32, #tpu.memory_space<vmem>>, vector<1x16x128xf32>
    %5 = vector.shape_cast %4 : vector<1x16x128xf32> to vector<16x128xf32>
    %c0_6 = arith.constant 0 : index
    %c0_7 = arith.constant 0 : index
    %c0_8 = arith.constant 0 : index
    %6 = vector.load %arg3[%c0_6, %c0_7, %c0_8] : memref<1x16x128xf32, #tpu.memory_space<vmem>>, vector<1x16x128xf32>
    %7 = vector.shape_cast %6 : vector<1x16x128xf32> to vector<16x128xf32>
    %8 = arith.mulf %5, %5 : vector<16x128xf32>
    %cst = arith.constant dense<0.000000e+00> : vector<16xf32>
    %9 = vector.multi_reduction <add>, %8, %cst [1] : vector<16x128xf32> to vector<16xf32>
    %10 = vector.shape_cast %9 : vector<16xf32> to vector<16x1xf32>
    %cst_9 = arith.constant 1.280000e+02 : f32
    %11 = vector.broadcast %cst_9 : f32 to vector<16x1xf32>
    %12 = arith.divf %10, %11 : vector<16x1xf32>
    %cst_10 = arith.constant 9.99999974E-6 : f32
    %13 = vector.broadcast %cst_10 : f32 to vector<16x1xf32>
    %14 = arith.addf %12, %13 : vector<16x1xf32>
    %15 = math.rsqrt %14 : vector<16x1xf32>
    %16 = vector.broadcast %15 : vector<16x1xf32> to vector<16x128xf32>
    %17 = arith.mulf %5, %16 : vector<16x128xf32>
    %18 = vector.broadcast %2 : vector<1x128xf32> to vector<16x128xf32>
    %19 = arith.mulf %17, %18 : vector<16x128xf32>
    %20 = arith.truncf %19 : vector<16x128xf32> to vector<16x128xbf16>
    %21 = arith.mulf %7, %7 : vector<16x128xf32>
    %cst_11 = arith.constant dense<0.000000e+00> : vector<16xf32>
    %22 = vector.multi_reduction <add>, %21, %cst_11 [1] : vector<16x128xf32> to vector<16xf32>
    %23 = vector.shape_cast %22 : vector<16xf32> to vector<16x1xf32>
    %cst_12 = arith.constant 1.280000e+02 : f32
    %24 = vector.broadcast %cst_12 : f32 to vector<16x1xf32>
    %25 = arith.divf %23, %24 : vector<16x1xf32>
    %cst_13 = arith.constant 9.99999974E-6 : f32
    %26 = vector.broadcast %cst_13 : f32 to vector<16x1xf32>
    %27 = arith.addf %25, %26 : vector<16x1xf32>
    %28 = math.rsqrt %27 : vector<16x1xf32>
    %29 = vector.broadcast %28 : vector<16x1xf32> to vector<16x128xf32>
    %30 = arith.mulf %7, %29 : vector<16x128xf32>
    %31 = vector.broadcast %2 : vector<1x128xf32> to vector<16x128xf32>
    %32 = arith.mulf %30, %31 : vector<16x128xf32>
    %33 = arith.truncf %32 : vector<16x128xf32> to vector<16x128xbf16>
    %c0_14 = arith.constant 0 : index
    %c0_15 = arith.constant 0 : index
    %34 = vector.load %arg6[%c0_14, %c0_15] : memref<128x128xbf16, #tpu.memory_space<vmem>>, vector<128x128xbf16>
    %cst_16 = arith.constant dense<0.000000e+00> : vector<16x128xf32>
    %35 = tpu.matmul %20, %34, %cst_16 {dimension_numbers = #tpu.dot_dimension_numbers<[1], [0], [0], [1], [0, 0, 1, 1], [], []>} : vector<16x128xbf16>, vector<128x128xbf16>, vector<16x128xf32> -> vector<16x128xf32>
    %c0_17 = arith.constant 0 : index
    %c0_18 = arith.constant 0 : index
    %36 = vector.load %arg7[%c0_17, %c0_18] : memref<128x128xbf16, #tpu.memory_space<vmem>>, vector<128x128xbf16>
    %cst_19 = arith.constant dense<0.000000e+00> : vector<16x128xf32>
    %37 = tpu.matmul %33, %36, %cst_19 {dimension_numbers = #tpu.dot_dimension_numbers<[1], [0], [0], [1], [0, 0, 1, 1], [], []>} : vector<16x128xbf16>, vector<128x128xbf16>, vector<16x128xf32> -> vector<16x128xf32>
    %cst_20 = arith.constant 0.176776692 : f32
    %38 = vector.broadcast %cst_20 : f32 to vector<16x128xf32>
    %39 = arith.mulf %35, %38 : vector<16x128xf32>
    %40 = vector.shape_cast %39 : vector<16x128xf32> to vector<16x4x32xf32>
    %41 = tpu.transpose %40, [1, 0, 2] : vector<16x4x32xf32> -> vector<4x16x32xf32>
    %42 = arith.truncf %41 : vector<4x16x32xf32> to vector<4x16x32xbf16>
    %43 = vector.shape_cast %37 : vector<16x128xf32> to vector<16x4x32xf32>
    %44 = tpu.transpose %43, [1, 0, 2] : vector<16x4x32xf32> -> vector<4x16x32xf32>
    %45 = vector.extract_strided_slice %44 {offsets = [0, 0, 0], sizes = [2, 16, 32], strides = [1, 1, 1]} : vector<4x16x32xf32> to vector<2x16x32xf32>
    %46 = arith.truncf %45 : vector<2x16x32xf32> to vector<2x16x32xbf16>
    %47 = vector.extract_strided_slice %44 {offsets = [2, 0, 0], sizes = [2, 16, 32], strides = [1, 1, 1]} : vector<4x16x32xf32> to vector<2x16x32xf32>
    %48 = arith.truncf %47 : vector<2x16x32xf32> to vector<2x16x32xbf16>
    %49 = vector.shape_cast %46 : vector<2x16x32xbf16> to vector<2x1x16x32xbf16>
    %50 = vector.shape_cast %49 : vector<2x1x16x32xbf16> to vector<2x1x16x32xbf16>
    %51 = vector.broadcast %50 : vector<2x1x16x32xbf16> to vector<2x2x16x32xbf16>
    %52 = vector.shape_cast %51 : vector<2x2x16x32xbf16> to vector<4x16x32xbf16>
    %53 = vector.shape_cast %48 : vector<2x16x32xbf16> to vector<2x1x16x32xbf16>
    %54 = vector.shape_cast %53 : vector<2x1x16x32xbf16> to vector<2x1x16x32xbf16>
    %55 = vector.broadcast %54 : vector<2x1x16x32xbf16> to vector<2x2x16x32xbf16>
    %56 = vector.shape_cast %55 : vector<2x2x16x32xbf16> to vector<4x16x32xbf16>
    "tpu.trace_start"() <{level = 10 : i32, message = "hqd,hkd->hqk"}> : () -> ()
    %cst_21 = arith.constant dense<0.000000e+00> : vector<4x16x16xf32>
    %57 = tpu.matmul %42, %52, %cst_21 {dimension_numbers = #tpu.dot_dimension_numbers<[2], [2], [1], [1], [0, 0, 0, 1, 1, 1], [0], [0]>} : vector<4x16x32xbf16>, vector<4x16x32xbf16>, vector<4x16x16xf32> -> vector<4x16x16xf32>
    "tpu.trace_stop"() : () -> ()
    %58 = tpu.iota {dimensions = array<i32: 0>} : vector<16x16xi32>
    %59 = vector.broadcast %1 : i32 to vector<16x16xi32>
    %60 = arith.addi %59, %58 : vector<16x16xi32>
    %61 = tpu.iota {dimensions = array<i32: 1>} : vector<16x16xi32>
    %62 = arith.cmpi sge, %60, %61 : vector<16x16xi32>
    %63 = vector.shape_cast %62 : vector<16x16xi1> to vector<1x16x16xi1>
    %cst_22 = arith.constant 0xFF800000 : f32
    %64 = vector.shape_cast %63 : vector<1x16x16xi1> to vector<1x16x16xi1>
    %65 = vector.broadcast %64 : vector<1x16x16xi1> to vector<4x16x16xi1>
    %66 = vector.broadcast %cst_22 : f32 to vector<4x16x16xf32>
    %67 = arith.select %65, %57, %66 : vector<4x16x16xi1>, vector<4x16x16xf32>
    %cst_23 = arith.constant dense<0xFF800000> : vector<4x16xf32>
    %68 = vector.multi_reduction <maximumf>, %67, %cst_23 [2] : vector<4x16x16xf32> to vector<4x16xf32>
    %69 = vector.shape_cast %68 : vector<4x16xf32> to vector<4x16x1xf32>
    %70 = vector.broadcast %69 : vector<4x16x1xf32> to vector<4x16x16xf32>
    %71 = arith.subf %67, %70 : vector<4x16x16xf32>
    %72 = math.exp %71 : vector<4x16x16xf32>
    %cst_24 = arith.constant dense<0.000000e+00> : vector<4x16xf32>
    %73 = vector.multi_reduction <add>, %72, %cst_24 [2] : vector<4x16x16xf32> to vector<4x16xf32>
    %74 = vector.shape_cast %73 : vector<4x16xf32> to vector<4x16x1xf32>
    %75 = tpu.reciprocal %74 {approx = true} : vector<4x16x1xf32> -> vector<4x16x1xf32>
    %76 = vector.broadcast %75 : vector<4x16x1xf32> to vector<4x16x16xf32>
    %77 = arith.mulf %72, %76 : vector<4x16x16xf32>
    %78 = arith.truncf %77 : vector<4x16x16xf32> to vector<4x16x16xbf16>
    "tpu.trace_start"() <{level = 10 : i32, message = "hqk,hkd->hqd"}> : () -> ()
    %cst_25 = arith.constant dense<0.000000e+00> : vector<4x16x32xf32>
    %79 = tpu.matmul %78, %56, %cst_25 {dimension_numbers = #tpu.dot_dimension_numbers<[2], [1], [1], [2], [0, 0, 0, 1, 1, 2], [0], [0]>} : vector<4x16x16xbf16>, vector<4x16x32xbf16>, vector<4x16x32xf32> -> vector<4x16x32xf32>
    "tpu.trace_stop"() : () -> ()
    %80 = tpu.transpose %79, [1, 0, 2] : vector<4x16x32xf32> -> vector<16x4x32xf32>
    %81 = vector.shape_cast %80 : vector<16x4x32xf32> to vector<16x128xf32>
    %82 = arith.truncf %81 : vector<16x128xf32> to vector<16x128xbf16>
    %c0_26 = arith.constant 0 : index
    %c0_27 = arith.constant 0 : index
    %83 = vector.load %arg8[%c0_26, %c0_27] : memref<128x128xbf16, #tpu.memory_space<vmem>>, vector<128x128xbf16>
    %cst_28 = arith.constant dense<0.000000e+00> : vector<16x128xf32>
    %84 = tpu.matmul %82, %83, %cst_28 {dimension_numbers = #tpu.dot_dimension_numbers<[1], [0], [0], [1], [0, 0, 1, 1], [], []>} : vector<16x128xbf16>, vector<128x128xbf16>, vector<16x128xf32> -> vector<16x128xf32>
    %85 = arith.addf %5, %84 : vector<16x128xf32>
    %86 = arith.mulf %85, %85 : vector<16x128xf32>
    %cst_29 = arith.constant dense<0.000000e+00> : vector<16xf32>
    %87 = vector.multi_reduction <add>, %86, %cst_29 [1] : vector<16x128xf32> to vector<16xf32>
    %88 = vector.shape_cast %87 : vector<16xf32> to vector<16x1xf32>
    %cst_30 = arith.constant 1.280000e+02 : f32
    %89 = vector.broadcast %cst_30 : f32 to vector<16x1xf32>
    %90 = arith.divf %88, %89 : vector<16x1xf32>
    %cst_31 = arith.constant 9.99999974E-6 : f32
    %91 = vector.broadcast %cst_31 : f32 to vector<16x1xf32>
    %92 = arith.addf %90, %91 : vector<16x1xf32>
    %93 = math.rsqrt %92 : vector<16x1xf32>
    %94 = vector.broadcast %93 : vector<16x1xf32> to vector<16x128xf32>
    %95 = arith.mulf %85, %94 : vector<16x128xf32>
    %96 = vector.broadcast %3 : vector<1x128xf32> to vector<16x128xf32>
    %97 = arith.mulf %95, %96 : vector<16x128xf32>
    %98 = arith.truncf %97 : vector<16x128xf32> to vector<16x128xbf16>
    %c0_32 = arith.constant 0 : index
    %c0_33 = arith.constant 0 : index
    %99 = vector.load %arg9[%c0_32, %c0_33] : memref<128x768xbf16, #tpu.memory_space<vmem>>, vector<128x768xbf16>
    %cst_34 = arith.constant dense<0.000000e+00> : vector<16x768xf32>
    %100 = tpu.matmul %98, %99, %cst_34 {dimension_numbers = #tpu.dot_dimension_numbers<[1], [0], [0], [1], [0, 0, 1, 1], [], []>} : vector<16x128xbf16>, vector<128x768xbf16>, vector<16x768xf32> -> vector<16x768xf32>
    %101 = vector.extract_strided_slice %100 {offsets = [0, 0], sizes = [16, 384], strides = [1, 1]} : vector<16x768xf32> to vector<16x384xf32>
    %102 = vector.extract_strided_slice %100 {offsets = [0, 384], sizes = [16, 384], strides = [1, 1]} : vector<16x768xf32> to vector<16x384xf32>
    %103 = arith.negf %101 : vector<16x384xf32>
    %104 = math.exp %103 : vector<16x384xf32>
    %cst_35 = arith.constant 1.000000e+00 : f32
    %105 = vector.broadcast %cst_35 : f32 to vector<16x384xf32>
    %106 = arith.addf %105, %104 : vector<16x384xf32>
    %107 = arith.divf %105, %106 : vector<16x384xf32>
    %108 = arith.mulf %101, %107 : vector<16x384xf32>
    %109 = arith.mulf %108, %102 : vector<16x384xf32>
    %110 = arith.truncf %109 : vector<16x384xf32> to vector<16x384xbf16>
    %c0_36 = arith.constant 0 : index
    %c0_37 = arith.constant 0 : index
    %111 = vector.load %arg10[%c0_36, %c0_37] : memref<384x128xbf16, #tpu.memory_space<vmem>>, vector<384x128xbf16>
    %cst_38 = arith.constant dense<0.000000e+00> : vector<16x128xf32>
    %112 = tpu.matmul %110, %111, %cst_38 {dimension_numbers = #tpu.dot_dimension_numbers<[1], [0], [0], [1], [0, 0, 1, 1], [], []>} : vector<16x384xbf16>, vector<384x128xbf16>, vector<16x128xf32> -> vector<16x128xf32>
    %113 = arith.addf %85, %112 : vector<16x128xf32>
    %c0_39 = arith.constant 0 : index
    %c0_40 = arith.constant 0 : index
    %c0_41 = arith.constant 0 : index
    %114 = vector.load %arg11[%c0_39, %c0_40, %c0_41] : memref<1x16x128xf32, #tpu.memory_space<vmem>>, vector<1x16x128xf32>
    %115 = vector.shape_cast %114 : vector<1x16x128xf32> to vector<16x128xf32>
    %116 = vector.shape_cast %113 : vector<16x128xf32> to vector<1x16x128xf32>
    tpu.vector_store %arg11[%c0_39, %c0_40, %c0_41], %116 {strides = array<i32>} : memref<1x16x128xf32, #tpu.memory_space<vmem>>, vector<1x16x128xf32>,
    return
  }
  func.func @transform_0(%arg0: i32, %arg1: i32) -> (i32, i32, i32) {
    %c0_i32 = arith.constant 0 : i32
    %c0_i32_0 = arith.constant 0 : i32
    return %arg0, %arg1, %c0_i32 : i32, i32, i32
  }
  func.func @transform_1(%arg0: i32, %arg1: i32) -> (i32, i32, i32) {
    %c0_i32 = arith.constant 0 : i32
    %c0_i32_0 = arith.constant 0 : i32
    %c0_i32_1 = arith.constant 0 : i32
    return %arg0, %c0_i32, %c0_i32_0 : i32, i32, i32
  }
  func.func @transform_2(%arg0: i32, %arg1: i32) -> (i32, i32) {
    %c0_i32 = arith.constant 0 : i32
    %c0_i32_0 = arith.constant 0 : i32
    %c0_i32_1 = arith.constant 0 : i32
    return %c0_i32, %c0_i32_0 : i32, i32
  }
  func.func @transform_3(%arg0: i32, %arg1: i32) -> (i32, i32) {
    %c0_i32 = arith.constant 0 : i32
    %c0_i32_0 = arith.constant 0 : i32
    %c0_i32_1 = arith.constant 0 : i32
    return %c0_i32, %c0_i32_0 : i32, i32
  }
  func.func @transform_4(%arg0: i32, %arg1: i32) -> (i32, i32) {
    %c0_i32 = arith.constant 0 : i32
    %c0_i32_0 = arith.constant 0 : i32
    %c0_i32_1 = arith.constant 0 : i32
    return %c0_i32, %c0_i32_0 : i32, i32
  }
  func.func @transform_5(%arg0: i32, %arg1: i32) -> (i32, i32) {
    %c0_i32 = arith.constant 0 : i32
    %c0_i32_0 = arith.constant 0 : i32
    %c0_i32_1 = arith.constant 0 : i32
    return %c0_i32, %c0_i32_0 : i32, i32
  }
  func.func @transform_6(%arg0: i32, %arg1: i32) -> (i32, i32) {
    %c0_i32 = arith.constant 0 : i32
    %c0_i32_0 = arith.constant 0 : i32
    %c0_i32_1 = arith.constant 0 : i32
    return %c0_i32, %c0_i32_0 : i32, i32
  }
  func.func @transform_7(%arg0: i32, %arg1: i32) -> (i32, i32) {
    %c0_i32 = arith.constant 0 : i32
    %c0_i32_0 = arith.constant 0 : i32
    %c0_i32_1 = arith.constant 0 : i32
    return %c0_i32, %c0_i32_0 : i32, i32
  }
  func.func @transform_8(%arg0: i32, %arg1: i32) -> (i32, i32) {
    %c0_i32 = arith.constant 0 : i32
    %c0_i32_0 = arith.constant 0 : i32
    %c0_i32_1 = arith.constant 0 : i32
    return %c0_i32, %c0_i32_0 : i32, i32
  }
  func.func @transform_9(%arg0: i32, %arg1: i32) -> (i32, i32, i32) {
    %c0_i32 = arith.constant 0 : i32
    %c0_i32_0 = arith.constant 0 : i32
    return %arg0, %arg1, %c0_i32 : i32, i32, i32
  }
}

</mosaic_0001>

<llo_original>
// kernel: tpu_custom_call.1
$region0: #{tpu_custom_call.1}
  #allocation0 [shape = 'u32[]', space=smem, size = 0x4, offset = 0x4, fixed_abs, tag = 'smem constant byte address 0x4 - core index']
  #allocation1 [shape = 'u32[144,128]{1,0:T(1,128)}', space=vmem, size = 0x12000, scoped, tag = 'internal scratch']
  %s0 = inlined_call_operand.hbm [shape: f32[2,16,128], index: 0, kind: input, shape index: {}]
  %s1 = inlined_call_operand.hbm [shape: f32[2,16,128], index: 1, kind: input, shape index: {}]
  %s2 = inlined_call_operand.vmem [shape: f32[1,128], index: 2, kind: input, shape index: {}]
  %s3 = inlined_call_operand.vmem [shape: f32[1,128], index: 3, kind: input, shape index: {}]
  %s4 = inlined_call_operand.hbm [shape: bf16[128,128], index: 4, kind: input, shape index: {}]
  %s5 = inlined_call_operand.hbm [shape: bf16[128,128], index: 5, kind: input, shape index: {}]
  %s6 = inlined_call_operand.hbm [shape: bf16[128,128], index: 6, kind: input, shape index: {}]
  %s7 = inlined_call_operand.hbm [shape: bf16[128,768], index: 7, kind: input, shape index: {}]
  %s8 = inlined_call_operand.hbm [shape: bf16[384,128], index: 8, kind: input, shape index: {}]
  %s9 = inlined_call_operand.hbm [shape: f32[2,16,128], index: 9, kind: output, shape index: {}]
  %s10 = sld [smem:[#allocation0]]
  $region97: #{tpu_custom_call.1} parent=0
    _
  %s12 = ssub.s32 1, %s10
  %s13 = scalar_select 0, %s12, %s10
  $region1: #{tpu_custom_call.1} parent=0
    #allocation2 [shape = 'u8[16384]{0}', space=vmem, size = 0x4000, scoped, tag = 'input window, operand 0']
    #allocation3 [shape = 's32[2]{0}', space=sflag, size = 0x8, scoped, tag = 'scoped memory for tpu_custom_call.1']
    #allocation4 [shape = 's32[2]{0}', space=sflag, size = 0x8, scoped, tag = 'scoped memory for tpu_custom_call.1']
    #allocation5 [shape = 'u8[16384]{0}', space=vmem, size = 0x4000, scoped, tag = 'input window, operand 1']
    #allocation6 [shape = 's32[2]{0}', space=sflag, size = 0x8, scoped, tag = 'scoped memory for tpu_custom_call.1']
    #allocation7 [shape = 'u8[32768]{0}', space=vmem, size = 0x8000, scoped, tag = 'input window, operand 4, single buffered']
    #allocation8 [shape = 'u8[32768]{0}', space=vmem, size = 0x8000, scoped, tag = 'input window, operand 5, single buffered']
    #allocation9 [shape = 's32[1]{0}', space=sflag, size = 0x4, scoped, tag = 'scoped memory for tpu_custom_call.1']
    #allocation10 [shape = 'u8[32768]{0}', space=vmem, size = 0x8000, scoped, tag = 'input window, operand 6, single buffered']
    #allocation11 [shape = 'u8[196608]{0}', space=vmem, size = 0x30000, scoped, tag = 'input window, operand 7, single buffered']
    #allocation12 [shape = 's32[1]{0}', space=sflag, size = 0x4, scoped, tag = 'scoped memory for tpu_custom_call.1']
    #allocation13 [shape = 'u8[98304]{0}', space=vmem, size = 0x18000, scoped, tag = 'input window, operand 8, single buffered']
    #allocation14 [shape = 'u8[16384]{0}', space=vmem, size = 0x4000, scoped, tag = 'output window, operand 0']
    %14 = vsyncpa [#allocation3], 0
    %s15 = scalar_lea.sflag [#allocation3], 1
    %16 = vsyncpa %s15, 0
    %17 = vsyncpa [#allocation6], 0
    %s18 = scalar_lea.sflag [#allocation6], 1
    %19 = vsyncpa %s18, 0
    %20 = vsyncpa [#allocation9], 0
    %21 = vsyncpa [#allocation12], 0
    %22 = vsyncpa [#allocation4], 0
    %s23 = scalar_lea.sflag [#allocation4], 1
    %24 = vsyncpa %s23, 0
    loop: start=0, step=1, limit=4
    $region2: #{tpu_custom_call.1} parent=1 // loop_pre_header
      _
    $region3: #{tpu_custom_call.1} parent=1 // loop_header
      %s26 = sphi 0, %s30
      %p27 = scmp.ge.s32.totalorder %s26, 4
      %s33 = sphi 0, %s45
      %s34 = sphi 0, %s41
      %s35 = sphi 0, %s33
      %s36 = sphi 0, %s34
      %s37 = sphi 0, %s35
      %s38 = sphi 0, %s36
      %s50 = sphi 0, %s52
      %s53 = sphi 0, %s50
      %s54 = sphi 0, %s53
      %s70 = sphi 0, %s54
      %s76 = sphi 0, %s78
      %s79 = sphi 0, %s76
      %s80 = sphi 0, %s79
      %s96 = sphi 0, %s80
      %s100 = sphi 0, %s100
      %s102 = sphi 0, %s100
      %s103 = sphi 0, %s102
      %s117 = sphi 0, %s103
      %s121 = sphi 0, %s121
      %s123 = sphi 0, %s121
      %s124 = sphi 0, %s123
      %s138 = sphi 0, %s124
      %s142 = sphi 0, %s142
      %s144 = sphi 0, %s142
      %s145 = sphi 0, %s144
      %s159 = sphi 0, %s145
      %s163 = sphi 0, %s163
      %s165 = sphi 0, %s163
      %s166 = sphi 0, %s165
      %s180 = sphi 0, %s166
      %s184 = sphi 0, %s184
      %s186 = sphi 0, %s184
      %s187 = sphi 0, %s186
      %s201 = sphi 0, %s187
      %s205 = sphi 0, %s205
      %s207 = sphi 0, %s205
      %s208 = sphi 0, %s207
      %s222 = sphi 0, %s208
      %s226 = sphi 0, %s226
      %s228 = sphi 0, %s226
      %s229 = sphi 0, %s228
      %s243 = sphi 0, %s229
      %s251 = sphi 0, %s253
      %s254 = sphi 0, %s251
      %s255 = sphi 0, %s254
      %s271 = sphi 0, %s255
    $region4: #{tpu_custom_call.1} parent=1 // loop_header_branch
      %29 = sbr.rel (%p27) target = $region8
    $region5: #{tpu_custom_call.1} parent=1 // loop_body
      %s31 = ssub.s32 %s26, 1
      %s32 = ssub.s32 %s26, 2
      %s39 = sadd.s32 1, %s34
      %p40 = scmp.ge.s32.totalorder %s39, 1
      %s41 = scalar_select %p40, 0, %s39
      %s42 = sadd.s32 1, %s33
      %s43 = scalar_select %p40, %s42, %s33
      %p44 = scmp.ge.s32.totalorder %s43, 2
      %s45 = scalar_select %p44, 0, %s43
      %s46 = ssub.s32 %s33, %s45
      %s47 = ssub.s32 %s34, %s41
      %s48 = sor.u32 %s46, %s47
      %p49 = scmp.eq.s32.totalorder %s48, 0
      %s51 = sadd.s32 %s50, 1
      %s52 = scalar_select %p49, %s50, %s51
      %p55 = pneg %p49
      %p56 = scmp.eq.s32.totalorder %s26, 1
      %p57 = por %p55, %p56
      %p58 = scmp.ne.s32.totalorder %s50, %s53
      %p59 = scmp.eq.s32.totalorder %s26, 0
      %p60 = por %p58, %p59
      %p61 = scmp.ne.s32.totalorder %s50, %s53
      %p62 = scmp.eq.s32.totalorder %s31, 1
      %p63 = por %p61, %p62
      %p64 = scmp.ne.s32.totalorder %s53, %s54
      %p65 = scmp.eq.s32.totalorder %s31, 0
      %p66 = por %p64, %p65
      %p67 = scmp.ne.s32.totalorder %s53, %s54
      %p68 = scmp.eq.s32.totalorder %s32, 1
      %p69 = por %p67, %p68
      %p71 = scmp.ne.s32.totalorder %s54, %s70
      %p72 = scmp.eq.s32.totalorder %s32, 0
      %p73 = por %p71, %p72
      %s74 = ssub.s32 %s33, %s45
      %p75 = scmp.eq.s32.totalorder %s74, 0
      %s77 = sadd.s32 %s76, 1
      %s78 = scalar_select %p75, %s76, %s77
      %p81 = pneg %p75
      %p82 = scmp.eq.s32.totalorder %s26, 1
      %p83 = por %p81, %p82
      %p84 = scmp.ne.s32.totalorder %s76, %s79
      %p85 = scmp.eq.s32.totalorder %s26, 0
      %p86 = por %p84, %p85
      %p87 = scmp.ne.s32.totalorder %s76, %s79
      %p88 = scmp.eq.s32.totalorder %s31, 1
      %p89 = por %p87, %p88
      %p90 = scmp.ne.s32.totalorder %s79, %s80
      %p91 = scmp.eq.s32.totalorder %s31, 0
      %p92 = por %p90, %p91
      %p93 = scmp.ne.s32.totalorder %s79, %s80
      %p94 = scmp.eq.s32.totalorder %s32, 1
      %p95 = por %p93, %p94
      %p97 = scmp.ne.s32.totalorder %s80, %s96
      %p98 = scmp.eq.s32.totalorder %s32, 0
      %p99 = por %p97, %p98
      %s101 = sadd.s32 %s100, 1
      %p104 = scmp.eq.s32.totalorder %s26, 1
      %p105 = scmp.ne.s32.totalorder %s100, %s102
      %p106 = scmp.eq.s32.totalorder %s26, 0
      %p107 = por %p105, %p106
      %p108 = scmp.ne.s32.totalorder %s100, %s102
      %p109 = scmp.eq.s32.totalorder %s31, 1
      %p110 = por %p108, %p109
      %p111 = scmp.ne.s32.totalorder %s102, %s103
      %p112 = scmp.eq.s32.totalorder %s31, 0
      %p113 = por %p111, %p112
      %p114 = scmp.ne.s32.totalorder %s102, %s103
      %p115 = scmp.eq.s32.totalorder %s32, 1
      %p116 = por %p114, %p115
      %p118 = scmp.ne.s32.totalorder %s103, %s117
      %p119 = scmp.eq.s32.totalorder %s32, 0
      %p120 = por %p118, %p119
      %s122 = sadd.s32 %s121, 1
      %p125 = scmp.eq.s32.totalorder %s26, 1
      %p126 = scmp.ne.s32.totalorder %s121, %s123
      %p127 = scmp.eq.s32.totalorder %s26, 0
      %p128 = por %p126, %p127
      %p129 = scmp.ne.s32.totalorder %s121, %s123
      %p130 = scmp.eq.s32.totalorder %s31, 1
      %p131 = por %p129, %p130
      %p132 = scmp.ne.s32.totalorder %s123, %s124
      %p133 = scmp.eq.s32.totalorder %s31, 0
      %p134 = por %p132, %p133
      %p135 = scmp.ne.s32.totalorder %s123, %s124
      %p136 = scmp.eq.s32.totalorder %s32, 1
      %p137 = por %p135, %p136
      %p139 = scmp.ne.s32.totalorder %s124, %s138
      %p140 = scmp.eq.s32.totalorder %s32, 0
      %p141 = por %p139, %p140
      %s143 = sadd.s32 %s142, 1
      %p146 = scmp.eq.s32.totalorder %s26, 1
      %p147 = scmp.ne.s32.totalorder %s142, %s144
      %p148 = scmp.eq.s32.totalorder %s26, 0
      %p149 = por %p147, %p148
      %p150 = scmp.ne.s32.totalorder %s142, %s144
      %p151 = scmp.eq.s32.totalorder %s31, 1
      %p152 = por %p150, %p151
      %p153 = scmp.ne.s32.totalorder %s144, %s145
      %p154 = scmp.eq.s32.totalorder %s31, 0
      %p155 = por %p153, %p154
      %p156 = scmp.ne.s32.totalorder %s144, %s145
      %p157 = scmp.eq.s32.totalorder %s32, 1
      %p158 = por %p156, %p157
      %p160 = scmp.ne.s32.totalorder %s145, %s159
      %p161 = scmp.eq.s32.totalorder %s32, 0
      %p162 = por %p160, %p161
      %s164 = sadd.s32 %s163, 1
      %p167 = scmp.eq.s32.totalorder %s26, 1
      %p168 = scmp.ne.s32.totalorder %s163, %s165
      %p169 = scmp.eq.s32.totalorder %s26, 0
      %p170 = por %p168, %p169
      %p171 = scmp.ne.s32.totalorder %s163, %s165
      %p172 = scmp.eq.s32.totalorder %s31, 1
      %p173 = por %p171, %p172
      %p174 = scmp.ne.s32.totalorder %s165, %s166
      %p175 = scmp.eq.s32.totalorder %s31, 0
      %p176 = por %p174, %p175
      %p177 = scmp.ne.s32.totalorder %s165, %s166
      %p178 = scmp.eq.s32.totalorder %s32, 1
      %p179 = por %p177, %p178
      %p181 = scmp.ne.s32.totalorder %s166, %s180
      %p182 = scmp.eq.s32.totalorder %s32, 0
      %p183 = por %p181, %p182
      %s185 = sadd.s32 %s184, 1
      %p188 = scmp.eq.s32.totalorder %s26, 1
      %p189 = scmp.ne.s32.totalorder %s184, %s186
      %p190 = scmp.eq.s32.totalorder %s26, 0
      %p191 = por %p189, %p190
      %p192 = scmp.ne.s32.totalorder %s184, %s186
      %p193 = scmp.eq.s32.totalorder %s31, 1
      %p194 = por %p192, %p193
      %p195 = scmp.ne.s32.totalorder %s186, %s187
      %p196 = scmp.eq.s32.totalorder %s31, 0
      %p197 = por %p195, %p196
      %p198 = scmp.ne.s32.totalorder %s186, %s187
      %p199 = scmp.eq.s32.totalorder %s32, 1
      %p200 = por %p198, %p199
      %p202 = scmp.ne.s32.totalorder %s187, %s201
      %p203 = scmp.eq.s32.totalorder %s32, 0
      %p204 = por %p202, %p203
      %s206 = sadd.s32 %s205, 1
      %p209 = scmp.eq.s32.totalorder %s26, 1
      %p210 = scmp.ne.s32.totalorder %s205, %s207
      %p211 = scmp.eq.s32.totalorder %s26, 0
      %p212 = por %p210, %p211
      %p213 = scmp.ne.s32.totalorder %s205, %s207
      %p214 = scmp.eq.s32.totalorder %s31, 1
      %p215 = por %p213, %p214
      %p216 = scmp.ne.s32.totalorder %s207, %s208
      %p217 = scmp.eq.s32.totalorder %s31, 0
      %p218 = por %p216, %p217
      %p219 = scmp.ne.s32.totalorder %s207, %s208
      %p220 = scmp.eq.s32.totalorder %s32, 1
      %p221 = por %p219, %p220
      %p223 = scmp.ne.s32.totalorder %s208, %s222
      %p224 = scmp.eq.s32.totalorder %s32, 0
      %p225 = por %p223, %p224
      %s227 = sadd.s32 %s226, 1
      %p230 = scmp.eq.s32.totalorder %s26, 1
      %p231 = scmp.ne.s32.totalorder %s226, %s228
      %p232 = scmp.eq.s32.totalorder %s26, 0
      %p233 = por %p231, %p232
      %p234 = scmp.ne.s32.totalorder %s226, %s228
      %p235 = scmp.eq.s32.totalorder %s31, 1
      %p236 = por %p234, %p235
      %p237 = scmp.ne.s32.totalorder %s228, %s229
      %p238 = scmp.eq.s32.totalorder %s31, 0
      %p239 = por %p237, %p238
      %p240 = scmp.ne.s32.totalorder %s228, %s229
      %p241 = scmp.eq.s32.totalorder %s32, 1
      %p242 = por %p240, %p241
      %p244 = scmp.ne.s32.totalorder %s229, %s243
      %p245 = scmp.eq.s32.totalorder %s32, 0
      %p246 = por %p244, %p245
      %s247 = ssub.s32 %s33, %s45
      %s248 = ssub.s32 %s34, %s41
      %s249 = sor.u32 %s247, %s248
      %p250 = scmp.eq.s32.totalorder %s249, 0
      %s252 = sadd.s32 %s251, 1
      %s253 = scalar_select %p250, %s251, %s252
      %p256 = pneg %p250
      %p257 = scmp.eq.s32.totalorder %s26, 1
      %p258 = por %p256, %p257
      %p259 = scmp.ne.s32.totalorder %s251, %s254
      %p260 = scmp.eq.s32.totalorder %s26, 0
      %p261 = por %p259, %p260
      %p262 = scmp.ne.s32.totalorder %s251, %s254
      %p263 = scmp.eq.s32.totalorder %s31, 1
      %p264 = por %p262, %p263
      %p265 = scmp.ne.s32.totalorder %s254, %s255
      %p266 = scmp.eq.s32.totalorder %s31, 0
      %p267 = por %p265, %p266
      %p268 = scmp.ne.s32.totalorder %s254, %s255
      %p269 = scmp.eq.s32.totalorder %s32, 1
      %p270 = por %p268, %p269
      %p272 = scmp.ne.s32.totalorder %s255, %s271
      %p273 = scmp.eq.s32.totalorder %s32, 0
      %p274 = por %p272, %p273
      %p275 = scmp.le.s32.totalorder 1, %s26
      %p276 = scmp.lt.s32.totalorder %s26, 3
      %p277 = pnand %p275, %p276
      %p278 = pneg %p277
      // Predicated region
      $region9: #{tpu_custom_call.1} parent=5 // pred_check
        _
      $region10: #{tpu_custom_call.1} parent=5 // pred_check_branch
        %280 = sbr.rel (%p277) target = $region12
      $region11: #{tpu_custom_call.1} parent=5 // pred_region
        %s281 = ssub.s32 %s26, 1
        // Predicated region
        $region13: #{tpu_custom_call.1} parent=11 // pred_check
          %p282 = pneg %p113
        $region14: #{tpu_custom_call.1} parent=11 // pred_check_branch
          %284 = sbr.rel (%p282) target = $region16
        $region15: #{tpu_custom_call.1} parent=11 // pred_region
          _
        $region16: #{tpu_custom_call.1} parent=11 // pred_fallthru
          _
        // Predicated region
        $region17: #{tpu_custom_call.1} parent=11 // pred_check
          %p285 = pneg %p134
        $region18: #{tpu_custom_call.1} parent=11 // pred_check_branch
          %287 = sbr.rel (%p285) target = $region20
        $region19: #{tpu_custom_call.1} parent=11 // pred_region
          _
        $region20: #{tpu_custom_call.1} parent=11 // pred_fallthru
          _
        // Predicated region
        $region21: #{tpu_custom_call.1} parent=11 // pred_check
          %p288 = pneg %p155
        $region22: #{tpu_custom_call.1} parent=11 // pred_check_branch
          %290 = sbr.rel (%p288) target = $region24
        $region23: #{tpu_custom_call.1} parent=11 // pred_region
          %s292 = ssub.s32 1024, 1024
          %293 = vsyncadd [#allocation6], %s292
          %s294 = sshll.u32 [#allocation7], 4
          %s295 = int_to_ptr.vmem [resolvable:$true] %s294
          %300 = dma.hbm_to_vmem [thread:$0]  %s4, 1024, %s295, [#allocation6], 64, 64, 4
        $region24: #{tpu_custom_call.1} parent=11 // pred_fallthru
          _
        // Predicated region
        $region25: #{tpu_custom_call.1} parent=11 // pred_check
          %p301 = pneg %p176
        $region26: #{tpu_custom_call.1} parent=11 // pred_check_branch
          %303 = sbr.rel (%p301) target = $region28
        $region27: #{tpu_custom_call.1} parent=11 // pred_region
          %s305 = ssub.s32 1024, 1024
          %306 = vsyncadd [#allocation9], %s305
          %s307 = sshll.u32 [#allocation8], 4
          %s308 = int_to_ptr.vmem [resolvable:$true] %s307
          %313 = dma.hbm_to_vmem [thread:$0]  %s5, 1024, %s308, [#allocation9], 64, 64, 4
        $region28: #{tpu_custom_call.1} parent=11 // pred_fallthru
          _
        // Predicated region
        $region29: #{tpu_custom_call.1} parent=11 // pred_check
          %p314 = pneg %p197
        $region30: #{tpu_custom_call.1} parent=11 // pred_check_branch
          %316 = sbr.rel (%p314) target = $region32
        $region31: #{tpu_custom_call.1} parent=11 // pred_region
          %s318 = ssub.s32 1024, 1024
          %319 = vsyncadd [#allocation9], %s318
          %s320 = sshll.u32 [#allocation10], 4
          %s321 = int_to_ptr.vmem [resolvable:$true] %s320
          %326 = dma.hbm_to_vmem [thread:$0]  %s6, 1024, %s321, [#allocation9], 64, 64, 4
        $region32: #{tpu_custom_call.1} parent=11 // pred_fallthru
          _
        // Predicated region
        $region33: #{tpu_custom_call.1} parent=11 // pred_check
          %p327 = pneg %p218
        $region34: #{tpu_custom_call.1} parent=11 // pred_check_branch
          %329 = sbr.rel (%p327) target = $region36
        $region35: #{tpu_custom_call.1} parent=11 // pred_region
          %s331 = ssub.s32 6144, 6144
          %332 = vsyncadd [#allocation12], %s331
          %s333 = sshll.u32 [#allocation11], 4
          %s334 = int_to_ptr.vmem [resolvable:$true] %s333
          %339 = dma.hbm_to_vmem [thread:$0]  %s7, 6144, %s334, [#allocation12], 384, 384, 24
        $region36: #{tpu_custom_call.1} parent=11 // pred_fallthru
          _
        // Predicated region
        $region37: #{tpu_custom_call.1} parent=11 // pred_check
          %p340 = pneg %p239
        $region38: #{tpu_custom_call.1} parent=11 // pred_check_branch
          %342 = sbr.rel (%p340) target = $region40
        $region39: #{tpu_custom_call.1} parent=11 // pred_region
          %s344 = ssub.s32 3072, 3072
          %345 = vsyncadd [#allocation12], %s344
          %s346 = sshll.u32 [#allocation13], 4
          %s347 = int_to_ptr.vmem [resolvable:$true] %s346
          %352 = dma.hbm_to_vmem [thread:$0]  %s8, 3072, %s347, [#allocation12], 64, 64, 4
        $region40: #{tpu_custom_call.1} parent=11 // pred_fallthru
          _
      $region12: #{tpu_custom_call.1} parent=5 // pred_fallthru
        _
      %p353 = scmp.lt.s32.totalorder %s26, 2
      // Predicated region
      $region41: #{tpu_custom_call.1} parent=5 // pred_check
        %p354 = pneg %p353
      $region42: #{tpu_custom_call.1} parent=5 // pred_check_branch
        %356 = sbr.rel (%p354) target = $region44
      $region43: #{tpu_custom_call.1} parent=5 // pred_region
        // Predicated region
        $region45: #{tpu_custom_call.1} parent=43 // pred_check
          %p357 = pneg %p60
        $region46: #{tpu_custom_call.1} parent=43 // pred_check_branch
          %359 = sbr.rel (%p357) target = $region48
        $region47: #{tpu_custom_call.1} parent=43 // pred_region
          %s360 = sand.u32 %s50, 1
          %s361 = scalar_lea.sflag [#allocation3], %s360
          %s362 = sand.u32 %s50, 1
          %s363 = smul.addr %s362, 16
          %s364 = scalar_lea.vmem [#allocation2], %s363
          %s365 = smul.u32 2, %s34
          %s367 = ssub.s32 256, 256
          %368 = vsyncadd %s361, %s367
          %s369 = smul.addr %s33, 2
          %s370 = sadd.s32 %s365, %s369
          %s371 = smul.addr %s370, 128
          %s372 = scalar_lea.hbm %s0, %s371
          %s373 = sshll.u32 %s364, 4
          %s374 = int_to_ptr.vmem [resolvable:$true] %s373
          %379 = dma.hbm_to_vmem [thread:$0]  %s372, 256, %s374, %s361, 128, 128, 8
        $region48: #{tpu_custom_call.1} parent=43 // pred_fallthru
          _
        // Predicated region
        $region49: #{tpu_custom_call.1} parent=43 // pred_check
          %p380 = pneg %p86
        $region50: #{tpu_custom_call.1} parent=43 // pred_check_branch
          %382 = sbr.rel (%p380) target = $region52
        $region51: #{tpu_custom_call.1} parent=43 // pred_region
          %s383 = sand.u32 %s26, 1
          %s384 = scalar_lea.sflag [#allocation6], %s383
          %s385 = sand.u32 %s76, 1
          %s386 = smul.addr %s385, 16
          %s387 = scalar_lea.vmem [#allocation5], %s386
          %s389 = ssub.s32 256, 256
          %390 = vsyncadd %s384, %s389
          %s391 = smul.addr %s33, 2
          %s392 = smul.addr %s391, 128
          %s393 = scalar_lea.hbm %s1, %s392
          %s394 = sshll.u32 %s387, 4
          %s395 = int_to_ptr.vmem [resolvable:$true] %s394
          %400 = dma.hbm_to_vmem [thread:$0]  %s393, 256, %s395, %s384, 128, 128, 8
        $region52: #{tpu_custom_call.1} parent=43 // pred_fallthru
          _
      $region44: #{tpu_custom_call.1} parent=5 // pred_fallthru
        _
      %p401 = scmp.le.s32.totalorder 1, %s26
      %p402 = scmp.lt.s32.totalorder %s26, 3
      %p403 = pnand %p401, %p402
      %p404 = pneg %p403
      // Predicated region
      $region53: #{tpu_custom_call.1} parent=5 // pred_check
        _
      $region54: #{tpu_custom_call.1} parent=5 // pred_check_branch
        %406 = sbr.rel (%p403) target = $region56
      $region55: #{tpu_custom_call.1} parent=5 // pred_region
        %s407 = ssub.s32 %s26, 1
        %s408 = sand.u32 %s53, 1
        %s409 = scalar_lea.sflag [#allocation3], %s408
        %s410 = sand.u32 %s53, 1
        %s411 = smul.addr %s410, 16
        %s412 = scalar_lea.vmem [#allocation2], %s411
        // Predicated region
        $region57: #{tpu_custom_call.1} parent=55 // pred_check
          %p413 = pneg %p66
        $region58: #{tpu_custom_call.1} parent=55 // pred_check_branch
          %415 = sbr.rel (%p413) target = $region60
        $region59: #{tpu_custom_call.1} parent=55 // pred_region
          %416 = dma.done %s409, 256
        $region60: #{tpu_custom_call.1} parent=55 // pred_fallthru
          _
        %s417 = sand.u32 %s31, 1
        %s418 = scalar_lea.sflag [#allocation6], %s417
        %s419 = sand.u32 %s79, 1
        %s420 = smul.addr %s419, 16
        %s421 = scalar_lea.vmem [#allocation5], %s420
        // Predicated region
        $region61: #{tpu_custom_call.1} parent=55 // pred_check
          %p422 = pneg %p92
        $region62: #{tpu_custom_call.1} parent=55 // pred_check_branch
          %424 = sbr.rel (%p422) target = $region64
        $region63: #{tpu_custom_call.1} parent=55 // pred_region
          %425 = dma.done %s418, 256
        $region64: #{tpu_custom_call.1} parent=55 // pred_fallthru
          _
        // Predicated region
        $region65: #{tpu_custom_call.1} parent=55 // pred_check
          %p426 = pneg %p155
        $region66: #{tpu_custom_call.1} parent=55 // pred_check_branch
          %428 = sbr.rel (%p426) target = $region68
        $region67: #{tpu_custom_call.1} parent=55 // pred_region
          %429 = dma.done [#allocation6], 1024
        $region68: #{tpu_custom_call.1} parent=55 // pred_fallthru
          _
        // Predicated region
        $region69: #{tpu_custom_call.1} parent=55 // pred_check
          %p430 = pneg %p176
        $region70: #{tpu_custom_call.1} parent=55 // pred_check_branch
          %432 = sbr.rel (%p430) target = $region72
        $region71: #{tpu_custom_call.1} parent=55 // pred_region
          %433 = dma.done [#allocation9], 1024
        $region72: #{tpu_custom_call.1} parent=55 // pred_fallthru
          _
        // Predicated region
        $region73: #{tpu_custom_call.1} parent=55 // pred_check
          %p434 = pneg %p197
        $region74: #{tpu_custom_call.1} parent=55 // pred_check_branch
          %436 = sbr.rel (%p434) target = $region76
        $region75: #{tpu_custom_call.1} parent=55 // pred_region
          %437 = dma.done [#allocation9], 1024
        $region76: #{tpu_custom_call.1} parent=55 // pred_fallthru
          _
        // Predicated region
        $region77: #{tpu_custom_call.1} parent=55 // pred_check
          %p438 = pneg %p218
        $region78: #{tpu_custom_call.1} parent=55 // pred_check_branch
          %440 = sbr.rel (%p438) target = $region80
        $region79: #{tpu_custom_call.1} parent=55 // pred_region
          %441 = dma.done [#allocation12], 6144
        $region80: #{tpu_custom_call.1} parent=55 // pred_fallthru
          _
        // Predicated region
        $region81: #{tpu_custom_call.1} parent=55 // pred_check
          %p442 = pneg %p239
        $region82: #{tpu_custom_call.1} parent=55 // pred_check_branch
          %444 = sbr.rel (%p442) target = $region84
        $region83: #{tpu_custom_call.1} parent=55 // pred_region
          %445 = dma.done [#allocation12], 3072
        $region84: #{tpu_custom_call.1} parent=55 // pred_fallthru
          _
        %s446 = sand.u32 %s53, 1
        %s447 = scalar_lea.sflag [#allocation3], %s446
        %s448 = sand.u32 %s53, 1
        %s449 = smul.addr %s448, 16
        %s450 = scalar_lea.vmem [#allocation2], %s449
        %p451 = pneg %p66
        %p452 = pneg %p63
        %s453 = sand.u32 %s31, 1
        %s454 = scalar_lea.sflag [#allocation6], %s453
        %s455 = sand.u32 %s79, 1
        %s456 = smul.addr %s455, 16
        %s457 = scalar_lea.vmem [#allocation5], %s456
        %p458 = pneg %p92
        %p459 = pneg %p89
        %p460 = pneg %p113
        %p461 = pneg %p110
        %p462 = pneg %p134
        %p463 = pneg %p131
        %p464 = pneg %p155
        %p465 = pneg %p152
        %p466 = pneg %p176
        %p467 = pneg %p173
        %p468 = pneg %p197
        %p469 = pneg %p194
        %p470 = pneg %p218
        %p471 = pneg %p215
        %p472 = pneg %p239
        %p473 = pneg %p236
        %p474 = pneg %p267
        %p475 = pneg %p264
        %s476 = sand.u32 %s254, 1
        %s477 = scalar_lea.sflag [#allocation4], %s476
        %s478 = sand.u32 %s254, 1
        %s479 = smul.addr %s478, 16
        %s480 = scalar_lea.vmem [#allocation14], %s479
        %s481 = smul.u32 2, %s36
        %s482 = smul.u32 2, %s36
        %s484 = smul.u32 %s36, 16
        %v485 = vld [vmem:[%s2] sm:$0x1]
        %v486 = vld [vmem:[%s3] sm:$0x1]
        %v487 = vld [vmem:[%s412] sm:$0xff]
        %v488 = vld [vmem:[%s412 + $0x8] sm:$0xff]
        %v489 = vld [vmem:[%s421] sm:$0xff]
        %v490 = vld [vmem:[%s421 + $0x8] sm:$0xff]
        %v491 = vmul.f32 %v487, %v487
        %v492 = vmul.f32 %v488, %v488
        %493 = vadd.xlane.f32.xlu0 %v491
        %v494 = vpop.xlane.xlu0 %493
        %495 = vadd.xlane.f32.xlu0 %v492
        %v496 = vpop.xlane.xlu0 %495
        %v497 = vrcp.pop 128.0
        %v498 = vmul.f32 %v494, %v497
        %v499 = vmul.f32 %v496, %v497
        %v500 = vadd.f32 %v498, 1e-05
        %v501 = vadd.f32 %v499, 1e-05
        %v502 = vrsqrt.pop %v500
        %v503 = vrsqrt.pop %v501
        %v504 = vmul.f32 %v487, %v502
        %v505 = vmul.f32 %v488, %v503
        %v507 = vlaneseq
        %v508 = vshrl.u32 %v507, 7
        %v509 = vsub.s32 0, %v508
        %v510 = vrot.slane %v485, %v509
        %v512 = vmul.f32 %v504, %v510
        %v513 = vmul.f32 %v505, %v510
        %v514 = vpack.c.bf16 %v513, %v512
        %v515 = vmul.f32 %v489, %v489
        %v516 = vmul.f32 %v490, %v490
        %517 = vadd.xlane.f32.xlu0 %v515
        %v518 = vpop.xlane.xlu0 %517
        %519 = vadd.xlane.f32.xlu0 %v516
        %v520 = vpop.xlane.xlu0 %519
        %v521 = vmul.f32 %v518, %v497
        %v522 = vmul.f32 %v520, %v497
        %v523 = vadd.f32 %v521, 1e-05
        %v524 = vadd.f32 %v522, 1e-05
        %v525 = vrsqrt.pop %v523
        %v526 = vrsqrt.pop %v524
        %v527 = vmul.f32 %v489, %v525
        %v528 = vmul.f32 %v490, %v526
        %v529 = vmul.f32 %v527, %v510
        %v530 = vmul.f32 %v528, %v510
        %v531 = vpack.c.bf16 %v530, %v529
        %v532 = vld [vmem:[#allocation7] sm:$0xf]
        %v533 = vld [vmem:[#allocation7 + $0x4] sm:$0xf]
        %v534 = vld [vmem:[#allocation7 + $0x8] sm:$0xf]
        %v535 = vld [vmem:[#allocation7 + $0xc] sm:$0xf]
        %v536 = vld [vmem:[#allocation7 + $0x10] sm:$0xf]
        %v537 = vld [vmem:[#allocation7 + $0x14] sm:$0xf]
        %v538 = vld [vmem:[#allocation7 + $0x18] sm:$0xf]
        %v539 = vld [vmem:[#allocation7 + $0x1c] sm:$0xf]
        %v540 = vld [vmem:[#allocation7 + $0x20] sm:$0xf]
        %v541 = vld [vmem:[#allocation7 + $0x24] sm:$0xf]
        %v542 = vld [vmem:[#allocation7 + $0x28] sm:$0xf]
        %v543 = vld [vmem:[#allocation7 + $0x2c] sm:$0xf]
        %v544 = vld [vmem:[#allocation7 + $0x30] sm:$0xf]
        %v545 = vld [vmem:[#allocation7 + $0x34] sm:$0xf]
        %v546 = vld [vmem:[#allocation7 + $0x38] sm:$0xf]
        %v547 = vld [vmem:[#allocation7 + $0x3c] sm:$0xf]
        %v564 = vunpack.c.l.b16 %v532
        %v565 = vunpack.c.l.b16 %v533
        %v566 = vunpack.c.l.b16 %v534
        %v567 = vunpack.c.l.b16 %v535
        %v568 = vunpack.c.l.b16 %v536
        %v569 = vunpack.c.l.b16 %v537
        %v570 = vunpack.c.l.b16 %v538
        %v571 = vunpack.c.l.b16 %v539
        %v572 = vunpack.c.l.b16 %v540
        %v573 = vunpack.c.l.b16 %v541
        %v574 = vunpack.c.l.b16 %v542
        %v575 = vunpack.c.l.b16 %v543
        %v576 = vunpack.c.l.b16 %v544
        %v577 = vunpack.c.l.b16 %v545
        %v578 = vunpack.c.l.b16 %v546
        %v579 = vunpack.c.l.b16 %v547
        %v580 = vpack.c.b16 %v565, %v564
        %v581 = vpack.c.b16 %v567, %v566
        %v582 = vpack.c.b16 %v569, %v568
        %v583 = vpack.c.b16 %v571, %v570
        %v584 = vpack.c.b16 %v573, %v572
        %v585 = vpack.c.b16 %v575, %v574
        %v586 = vpack.c.b16 %v577, %v576
        %v587 = vpack.c.b16 %v579, %v578
        %596 = vmatprep.subr.bf16.mxu0 0
        %597 = vmatpush1.bf16.msra.mxu0 %v580
        %598 = vmatprep.subr.bf16.mxu0 0
        %599 = vmatpush1.bf16.msra.mxu0 %v581
        %600 = vmatprep.subr.bf16.mxu0 0
        %601 = vmatpush1.bf16.msra.mxu0 %v582
        %602 = vmatprep.subr.bf16.mxu0 0
        %603 = vmatpush1.bf16.msra.mxu0 %v583
        %604 = vmatprep.subr.bf16.mxu0 0
        %605 = vmatpush1.bf16.msra.mxu0 %v584
        %606 = vmatprep.subr.bf16.mxu0 0
        %607 = vmatpush1.bf16.msra.mxu0 %v585
        %608 = vmatprep.subr.bf16.mxu0 0
        %609 = vmatpush1.bf16.msra.mxu0 %v586
        %610 = vmatprep.subr.bf16.mxu0 0
        %611 = vmatpush1.bf16.msra.mxu0 %v587
        %612 = vmatprep.subr.bf16.mxu0 0
        %613 = vmatpush1.bf16.msra.mxu0 0
        %614 = vmatprep.subr.bf16.mxu0 0
        %615 = vmatpush1.bf16.msra.mxu0 0
        %616 = vmatprep.subr.bf16.mxu0 0
        %617 = vmatpush1.bf16.msra.mxu0 0
        %618 = vmatprep.subr.bf16.mxu0 0
        %619 = vmatpush1.bf16.msra.mxu0 0
        %620 = vmatprep.subr.bf16.mxu0 0
        %621 = vmatpush1.bf16.msra.mxu0 0
        %622 = vmatprep.subr.bf16.mxu0 0
        %623 = vmatpush1.bf16.msra.mxu0 0
        %624 = vmatprep.subr.bf16.mxu0 0
        %625 = vmatpush1.bf16.msra.mxu0 0
        %626 = vmatprep.subr.bf16.mxu0 0
        %627 = vmatpush1.bf16.msra.mxu0 0
        %628 = vmatprep.mubr.bf16.mxu0 0
        %629 = vmatmul.mubr.bf16.gmra.mrb[0].mxu0 %v514
        %v630 = vpop.f32.mrb[0].mxu0
        %v631 = vadd.f32 0.0, %v630
        %v632 = vpop.f32.mrb[0].mxu0
        %v633 = vpop.f32.mrb[0].mxu0
        %v634 = vadd.f32 0.0, %v633
        %v635 = vpop.f32.mrb[0].mxu0
        %636 = vdwg.mxu0
        %v637 = vld [vmem:[#allocation8] sm:$0xf]
        %v638 = vld [vmem:[#allocation8 + $0x4] sm:$0xf]
        %v639 = vld [vmem:[#allocation8 + $0x8] sm:$0xf]
        %v640 = vld [vmem:[#allocation8 + $0xc] sm:$0xf]
        %v641 = vld [vmem:[#allocation8 + $0x10] sm:$0xf]
        %v642 = vld [vmem:[#allocation8 + $0x14] sm:$0xf]
        %v643 = vld [vmem:[#allocation8 + $0x18] sm:$0xf]
        %v644 = vld [vmem:[#allocation8 + $0x1c] sm:$0xf]
        %v645 = vld [vmem:[#allocation8 + $0x20] sm:$0xf]
        %v646 = vld [vmem:[#allocation8 + $0x24] sm:$0xf]
        %v647 = vld [vmem:[#allocation8 + $0x28] sm:$0xf]
        %v648 = vld [vmem:[#allocation8 + $0x2c] sm:$0xf]
        %v649 = vld [vmem:[#allocation8 + $0x30] sm:$0xf]
        %v650 = vld [vmem:[#allocation8 + $0x34] sm:$0xf]
        %v651 = vld [vmem:[#allocation8 + $0x38] sm:$0xf]
        %v652 = vld [vmem:[#allocation8 + $0x3c] sm:$0xf]
        %v669 = vunpack.c.l.b16 %v637
        %v670 = vunpack.c.l.b16 %v638
        %v671 = vunpack.c.l.b16 %v639
        %v672 = vunpack.c.l.b16 %v640
        %v673 = vunpack.c.l.b16 %v641
        %v674 = vunpack.c.l.b16 %v642
        %v675 = vunpack.c.l.b16 %v643
        %v676 = vunpack.c.l.b16 %v644
        %v677 = vunpack.c.l.b16 %v645
        %v678 = vunpack.c.l.b16 %v646
        %v679 = vunpack.c.l.b16 %v647
        %v680 = vunpack.c.l.b16 %v648
        %v681 = vunpack.c.l.b16 %v649
        %v682 = vunpack.c.l.b16 %v650
        %v683 = vunpack.c.l.b16 %v651
        %v684 = vunpack.c.l.b16 %v652
        %v685 = vpack.c.b16 %v670, %v669
        %v686 = vpack.c.b16 %v672, %v671
        %v687 = vpack.c.b16 %v674, %v673
        %v688 = vpack.c.b16 %v676, %v675
        %v689 = vpack.c.b16 %v678, %v677
        %v690 = vpack.c.b16 %v680, %v679
        %v691 = vpack.c.b16 %v682, %v681
        %v692 = vpack.c.b16 %v684, %v683
        %701 = vmatprep.subr.bf16.mxu0 0
        %702 = vmatpush1.bf16.msra.mxu0 %v685
        %703 = vmatprep.subr.bf16.mxu0 0
        %704 = vmatpush1.bf16.msra.mxu0 %v686
        %705 = vmatprep.subr.bf16.mxu0 0
        %706 = vmatpush1.bf16.msra.mxu0 %v687
        %707 = vmatprep.subr.bf16.mxu0 0
        %708 = vmatpush1.bf16.msra.mxu0 %v688
        %709 = vmatprep.subr.bf16.mxu0 0
        %710 = vmatpush1.bf16.msra.mxu0 %v689
        %711 = vmatprep.subr.bf16.mxu0 0
        %712 = vmatpush1.bf16.msra.mxu0 %v690
        %713 = vmatprep.subr.bf16.mxu0 0
        %714 = vmatpush1.bf16.msra.mxu0 %v691
        %715 = vmatprep.subr.bf16.mxu0 0
        %716 = vmatpush1.bf16.msra.mxu0 %v692
        %717 = vmatprep.subr.bf16.mxu0 0
        %718 = vmatpush1.bf16.msra.mxu0 0
        %719 = vmatprep.subr.bf16.mxu0 0
        %720 = vmatpush1.bf16.msra.mxu0 0
        %721 = vmatprep.subr.bf16.mxu0 0
        %722 = vmatpush1.bf16.msra.mxu0 0
        %723 = vmatprep.subr.bf16.mxu0 0
        %724 = vmatpush1.bf16.msra.mxu0 0
        %725 = vmatprep.subr.bf16.mxu0 0
        %726 = vmatpush1.bf16.msra.mxu0 0
        %727 = vmatprep.subr.bf16.mxu0 0
        %728 = vmatpush1.bf16.msra.mxu0 0
        %729 = vmatprep.subr.bf16.mxu0 0
        %730 = vmatpush1.bf16.msra.mxu0 0
        %731 = vmatprep.subr.bf16.mxu0 0
        %732 = vmatpush1.bf16.msra.mxu0 0
        %733 = vmatprep.mubr.bf16.mxu0 0
        %734 = vmatmul.mubr.bf16.gmra.mrb[0].mxu0 %v531
        %v735 = vpop.f32.mrb[0].mxu0
        %v736 = vadd.f32 0.0, %v735
        %v737 = vpop.f32.mrb[0].mxu0
        %v738 = vpop.f32.mrb[0].mxu0
        %v739 = vadd.f32 0.0, %v738
        %v740 = vpop.f32.mrb[0].mxu0
        %741 = vdwg.mxu0
        %v742 = vmul.f32 %v631, 0.17677669
        %v743 = vmul.f32 %v634, 0.17677669
        %746 = vrot.lane.b32.xlu0 %v742, 96
        %v747 = vpop.permute.xlu0 %746
        %748 = vrot.lane.b32.xlu0 %v743, 96
        %v749 = vpop.permute.xlu0 %748
        %752 = vrot.lane.b32.xlu0 %v742, 64
        %v753 = vpop.permute.xlu0 %752
        %754 = vrot.lane.b32.xlu0 %v743, 64
        %v755 = vpop.permute.xlu0 %754
        %758 = vrot.lane.b32.xlu0 %v742, 32
        %v759 = vpop.permute.xlu0 %758
        %760 = vrot.lane.b32.xlu0 %v743, 32
        %v761 = vpop.permute.xlu0 %760
        %v764 = vcombine.low %v742, %v753
        %v765 = vcombine.high %v742, %v753
        %v767 = vunpack.c.l.s4 1983009808
        %v768 = vunpack.c.0.s8 %v767
        %v769 = vlaneseq
        %v770 = vshrl.u32 %v769, 7
        %v771 = vsub.s32 %v768, %v770
        %v772 = vrot.slane %v764, %v771
        %v774 = vunpack.c.l.s4 1983009808
        %v775 = vunpack.c.0.s8 %v774
        %v776 = vlaneseq
        %v777 = vshrl.u32 %v776, 7
        %v778 = vsub.s32 %v775, %v777
        %v779 = vrot.slane %v765, %v778
        %v780 = vcombine.low %v747, %v759
        %v781 = vcombine.high %v747, %v759
        %v783 = vunpack.c.l.s4 1983009808
        %v784 = vunpack.c.0.s8 %v783
        %v785 = vlaneseq
        %v786 = vshrl.u32 %v785, 7
        %v787 = vsub.s32 %v784, %v786
        %v788 = vrot.slane %v780, %v787
        %v790 = vunpack.c.l.s4 1983009808
        %v791 = vunpack.c.0.s8 %v790
        %v792 = vlaneseq
        %v793 = vshrl.u32 %v792, 7
        %v794 = vsub.s32 %v791, %v793
        %v795 = vrot.slane %v781, %v794
        %v796 = vcombine.low %v772, %v788
        %v797 = vcombine.high %v772, %v788
        %v799 = vunpack.c.l.s4 1934713408
        %v800 = vunpack.c.0.s8 %v799
        %v801 = vlaneseq
        %v802 = vshrl.u32 %v801, 7
        %v803 = vsub.s32 %v800, %v802
        %v804 = vrot.slane %v796, %v803
        %v806 = vunpack.c.l.s4 1934713408
        %v807 = vunpack.c.0.s8 %v806
        %v808 = vlaneseq
        %v809 = vshrl.u32 %v808, 7
        %v810 = vsub.s32 %v807, %v809
        %v811 = vrot.slane %v797, %v810
        %v812 = vcombine.low %v779, %v795
        %v813 = vcombine.high %v779, %v795
        %v815 = vunpack.c.l.s4 1934713408
        %v816 = vunpack.c.0.s8 %v815
        %v817 = vlaneseq
        %v818 = vshrl.u32 %v817, 7
        %v819 = vsub.s32 %v816, %v818
        %v820 = vrot.slane %v812, %v819
        %v822 = vunpack.c.l.s4 1934713408
        %v823 = vunpack.c.0.s8 %v822
        %v824 = vlaneseq
        %v825 = vshrl.u32 %v824, 7
        %v826 = vsub.s32 %v823, %v825
        %v827 = vrot.slane %v813, %v826
        %v828 = vcombine.high %v804, 0.0
        %v829 = vcombine.high %v811, 0.0
        %v830 = vcombine.high %v820, 0.0
        %v831 = vcombine.high %v827, 0.0
        %v832 = vcombine.low %v743, %v755
        %v833 = vcombine.high %v743, %v755
        %v835 = vunpack.c.l.s4 1983009808
        %v836 = vunpack.c.0.s8 %v835
        %v837 = vlaneseq
        %v838 = vshrl.u32 %v837, 7
        %v839 = vsub.s32 %v836, %v838
        %v840 = vrot.slane %v832, %v839
        %v842 = vunpack.c.l.s4 1983009808
        %v843 = vunpack.c.0.s8 %v842
        %v844 = vlaneseq
        %v845 = vshrl.u32 %v844, 7
        %v846 = vsub.s32 %v843, %v845
        %v847 = vrot.slane %v833, %v846
        %v848 = vcombine.low %v749, %v761
        %v849 = vcombine.high %v749, %v761
        %v851 = vunpack.c.l.s4 1983009808
        %v852 = vunpack.c.0.s8 %v851
        %v853 = vlaneseq
        %v854 = vshrl.u32 %v853, 7
        %v855 = vsub.s32 %v852, %v854
        %v856 = vrot.slane %v848, %v855
        %v858 = vunpack.c.l.s4 1983009808
        %v859 = vunpack.c.0.s8 %v858
        %v860 = vlaneseq
        %v861 = vshrl.u32 %v860, 7
        %v862 = vsub.s32 %v859, %v861
        %v863 = vrot.slane %v849, %v862
        %v864 = vcombine.low %v840, %v856
        %v865 = vcombine.high %v840, %v856
        %v867 = vunpack.c.l.s4 1934713408
        %v868 = vunpack.c.0.s8 %v867
        %v869 = vlaneseq
        %v870 = vshrl.u32 %v869, 7
        %v871 = vsub.s32 %v868, %v870
        %v872 = vrot.slane %v864, %v871
        %v874 = vunpack.c.l.s4 1934713408
        %v875 = vunpack.c.0.s8 %v874
        %v876 = vlaneseq
        %v877 = vshrl.u32 %v876, 7
        %v878 = vsub.s32 %v875, %v877
        %v879 = vrot.slane %v865, %v878
        %v880 = vcombine.low %v847, %v863
        %v881 = vcombine.high %v847, %v863
        %v883 = vunpack.c.l.s4 1934713408
        %v884 = vunpack.c.0.s8 %v883
        %v885 = vlaneseq
        %v886 = vshrl.u32 %v885, 7
        %v887 = vsub.s32 %v884, %v886
        %v888 = vrot.slane %v880, %v887
        %v890 = vunpack.c.l.s4 1934713408
        %v891 = vunpack.c.0.s8 %v890
        %v892 = vlaneseq
        %v893 = vshrl.u32 %v892, 7
        %v894 = vsub.s32 %v891, %v893
        %v895 = vrot.slane %v881, %v894
        %v896 = vcombine.high %v872, 0.0
        %v897 = vcombine.high %v879, 0.0
        %v898 = vcombine.high %v888, 0.0
        %v899 = vcombine.high %v895, 0.0
        %v900 = vcombine.low %v804, %v811
        %v902 = vunpack.c.l.s4 1983009808
        %v903 = vunpack.c.0.s8 %v902
        %v904 = vlaneseq
        %v905 = vshrl.u32 %v904, 7
        %v906 = vsub.s32 %v903, %v905
        %v907 = vrot.slane %v900, %v906
        %v908 = vcombine.low %v828, %v829
        %v910 = vunpack.c.l.s4 1983009808
        %v911 = vunpack.c.0.s8 %v910
        %v912 = vlaneseq
        %v913 = vshrl.u32 %v912, 7
        %v914 = vsub.s32 %v911, %v913
        %v915 = vrot.slane %v908, %v914
        %v916 = vcombine.low %v820, %v827
        %v918 = vunpack.c.l.s4 1983009808
        %v919 = vunpack.c.0.s8 %v918
        %v920 = vlaneseq
        %v921 = vshrl.u32 %v920, 7
        %v922 = vsub.s32 %v919, %v921
        %v923 = vrot.slane %v916, %v922
        %v924 = vcombine.low %v830, %v831
        %v926 = vunpack.c.l.s4 1983009808
        %v927 = vunpack.c.0.s8 %v926
        %v928 = vlaneseq
        %v929 = vshrl.u32 %v928, 7
        %v930 = vsub.s32 %v927, %v929
        %v931 = vrot.slane %v924, %v930
        %v932 = vcombine.low %v907, %v915
        %v933 = vcombine.high %v907, %v915
        %v935 = vunpack.c.l.s4 1934713408
        %v936 = vunpack.c.0.s8 %v935
        %v937 = vlaneseq
        %v938 = vshrl.u32 %v937, 7
        %v939 = vsub.s32 %v936, %v938
        %v940 = vrot.slane %v932, %v939
        %v942 = vunpack.c.l.s4 1934713408
        %v943 = vunpack.c.0.s8 %v942
        %v944 = vlaneseq
        %v945 = vshrl.u32 %v944, 7
        %v946 = vsub.s32 %v943, %v945
        %v947 = vrot.slane %v933, %v946
        %v948 = vcombine.low %v923, %v931
        %v949 = vcombine.high %v923, %v931
        %v951 = vunpack.c.l.s4 1934713408
        %v952 = vunpack.c.0.s8 %v951
        %v953 = vlaneseq
        %v954 = vshrl.u32 %v953, 7
        %v955 = vsub.s32 %v952, %v954
        %v956 = vrot.slane %v948, %v955
        %v958 = vunpack.c.l.s4 1934713408
        %v959 = vunpack.c.0.s8 %v958
        %v960 = vlaneseq
        %v961 = vshrl.u32 %v960, 7
        %v962 = vsub.s32 %v959, %v961
        %v963 = vrot.slane %v949, %v962
        %v964 = vcombine.low %v940, %v956
        %v965 = vcombine.high %v940, %v956
        %v966 = vcombine.low %v947, %v963
        %v967 = vcombine.high %v947, %v963
        %v968 = vcombine.low %v872, %v879
        %v970 = vunpack.c.l.s4 1983009808
        %v971 = vunpack.c.0.s8 %v970
        %v972 = vlaneseq
        %v973 = vshrl.u32 %v972, 7
        %v974 = vsub.s32 %v971, %v973
        %v975 = vrot.slane %v968, %v974
        %v976 = vcombine.low %v896, %v897
        %v978 = vunpack.c.l.s4 1983009808
        %v979 = vunpack.c.0.s8 %v978
        %v980 = vlaneseq
        %v981 = vshrl.u32 %v980, 7
        %v982 = vsub.s32 %v979, %v981
        %v983 = vrot.slane %v976, %v982
        %v984 = vcombine.low %v888, %v895
        %v986 = vunpack.c.l.s4 1983009808
        %v987 = vunpack.c.0.s8 %v986
        %v988 = vlaneseq
        %v989 = vshrl.u32 %v988, 7
        %v990 = vsub.s32 %v987, %v989
        %v991 = vrot.slane %v984, %v990
        %v992 = vcombine.low %v898, %v899
        %v994 = vunpack.c.l.s4 1983009808
        %v995 = vunpack.c.0.s8 %v994
        %v996 = vlaneseq
        %v997 = vshrl.u32 %v996, 7
        %v998 = vsub.s32 %v995, %v997
        %v999 = vrot.slane %v992, %v998
        %v1000 = vcombine.low %v975, %v983
        %v1001 = vcombine.high %v975, %v983
        %v1003 = vunpack.c.l.s4 1934713408
        %v1004 = vunpack.c.0.s8 %v1003
        %v1005 = vlaneseq
        %v1006 = vshrl.u32 %v1005, 7
        %v1007 = vsub.s32 %v1004, %v1006
        %v1008 = vrot.slane %v1000, %v1007
        %v1010 = vunpack.c.l.s4 1934713408
        %v1011 = vunpack.c.0.s8 %v1010
        %v1012 = vlaneseq
        %v1013 = vshrl.u32 %v1012, 7
        %v1014 = vsub.s32 %v1011, %v1013
        %v1015 = vrot.slane %v1001, %v1014
        %v1016 = vcombine.low %v991, %v999
        %v1017 = vcombine.high %v991, %v999
        %v1019 = vunpack.c.l.s4 1934713408
        %v1020 = vunpack.c.0.s8 %v1019
        %v1021 = vlaneseq
        %v1022 = vshrl.u32 %v1021, 7
        %v1023 = vsub.s32 %v1020, %v1022
        %v1024 = vrot.slane %v1016, %v1023
        %v1026 = vunpack.c.l.s4 1934713408
        %v1027 = vunpack.c.0.s8 %v1026
        %v1028 = vlaneseq
        %v1029 = vshrl.u32 %v1028, 7
        %v1030 = vsub.s32 %v1027, %v1029
        %v1031 = vrot.slane %v1017, %v1030
        %v1032 = vcombine.low %v1008, %v1024
        %v1033 = vcombine.high %v1008, %v1024
        %v1034 = vcombine.low %v1015, %v1031
        %v1035 = vcombine.high %v1015, %v1031
        %v1036 = vpack.c.bf16 %v1032, %v964
        %v1037 = vpack.c.bf16 %v1033, %v965
        %v1038 = vpack.c.bf16 %v1034, %v966
        %v1039 = vpack.c.bf16 %v1035, %v967
        %1042 = vrot.lane.b32.xlu0 %v736, 96
        %v1043 = vpop.permute.xlu0 %1042
        %1044 = vrot.lane.b32.xlu0 %v739, 96
        %v1045 = vpop.permute.xlu0 %1044
        %1048 = vrot.lane.b32.xlu0 %v736, 64
        %v1049 = vpop.permute.xlu0 %1048
        %1050 = vrot.lane.b32.xlu0 %v739, 64
        %v1051 = vpop.permute.xlu0 %1050
        %1054 = vrot.lane.b32.xlu0 %v736, 32
        %v1055 = vpop.permute.xlu0 %1054
        %1056 = vrot.lane.b32.xlu0 %v739, 32
        %v1057 = vpop.permute.xlu0 %1056
        %v1060 = vcombine.low %v736, %v1049
        %v1061 = vcombine.high %v736, %v1049
        %v1063 = vunpack.c.l.s4 1983009808
        %v1064 = vunpack.c.0.s8 %v1063
        %v1065 = vlaneseq
        %v1066 = vshrl.u32 %v1065, 7
        %v1067 = vsub.s32 %v1064, %v1066
        %v1068 = vrot.slane %v1060, %v1067
        %v1070 = vunpack.c.l.s4 1983009808
        %v1071 = vunpack.c.0.s8 %v1070
        %v1072 = vlaneseq
        %v1073 = vshrl.u32 %v1072, 7
        %v1074 = vsub.s32 %v1071, %v1073
        %v1075 = vrot.slane %v1061, %v1074
        %v1076 = vcombine.low %v1043, %v1055
        %v1077 = vcombine.high %v1043, %v1055
        %v1079 = vunpack.c.l.s4 1983009808
        %v1080 = vunpack.c.0.s8 %v1079
        %v1081 = vlaneseq
        %v1082 = vshrl.u32 %v1081, 7
        %v1083 = vsub.s32 %v1080, %v1082
        %v1084 = vrot.slane %v1076, %v1083
        %v1086 = vunpack.c.l.s4 1983009808
        %v1087 = vunpack.c.0.s8 %v1086
        %v1088 = vlaneseq
        %v1089 = vshrl.u32 %v1088, 7
        %v1090 = vsub.s32 %v1087, %v1089
        %v1091 = vrot.slane %v1077, %v1090
        %v1092 = vcombine.low %v1068, %v1084
        %v1093 = vcombine.high %v1068, %v1084
        %v1095 = vunpack.c.l.s4 1934713408
        %v1096 = vunpack.c.0.s8 %v1095
        %v1097 = vlaneseq
        %v1098 = vshrl.u32 %v1097, 7
        %v1099 = vsub.s32 %v1096, %v1098
        %v1100 = vrot.slane %v1092, %v1099
        %v1102 = vunpack.c.l.s4 1934713408
        %v1103 = vunpack.c.0.s8 %v1102
        %v1104 = vlaneseq
        %v1105 = vshrl.u32 %v1104, 7
        %v1106 = vsub.s32 %v1103, %v1105
        %v1107 = vrot.slane %v1093, %v1106
        %v1108 = vcombine.low %v1075, %v1091
        %v1109 = vcombine.high %v1075, %v1091
        %v1111 = vunpack.c.l.s4 1934713408
        %v1112 = vunpack.c.0.s8 %v1111
        %v1113 = vlaneseq
        %v1114 = vshrl.u32 %v1113, 7
        %v1115 = vsub.s32 %v1112, %v1114
        %v1116 = vrot.slane %v1108, %v1115
        %v1118 = vunpack.c.l.s4 1934713408
        %v1119 = vunpack.c.0.s8 %v1118
        %v1120 = vlaneseq
        %v1121 = vshrl.u32 %v1120, 7
        %v1122 = vsub.s32 %v1119, %v1121
        %v1123 = vrot.slane %v1109, %v1122
        %v1124 = vcombine.high %v1100, 0.0
        %v1125 = vcombine.high %v1107, 0.0
        %v1126 = vcombine.high %v1116, 0.0
        %v1127 = vcombine.high %v1123, 0.0
        %v1128 = vcombine.low %v739, %v1051
        %v1129 = vcombine.high %v739, %v1051
        %v1131 = vunpack.c.l.s4 1983009808
        %v1132 = vunpack.c.0.s8 %v1131
        %v1133 = vlaneseq
        %v1134 = vshrl.u32 %v1133, 7
        %v1135 = vsub.s32 %v1132, %v1134
        %v1136 = vrot.slane %v1128, %v1135
        %v1138 = vunpack.c.l.s4 1983009808
        %v1139 = vunpack.c.0.s8 %v1138
        %v1140 = vlaneseq
        %v1141 = vshrl.u32 %v1140, 7
        %v1142 = vsub.s32 %v1139, %v1141
        %v1143 = vrot.slane %v1129, %v1142
        %v1144 = vcombine.low %v1045, %v1057
        %v1145 = vcombine.high %v1045, %v1057
        %v1147 = vunpack.c.l.s4 1983009808
        %v1148 = vunpack.c.0.s8 %v1147
        %v1149 = vlaneseq
        %v1150 = vshrl.u32 %v1149, 7
        %v1151 = vsub.s32 %v1148, %v1150
        %v1152 = vrot.slane %v1144, %v1151
        %v1154 = vunpack.c.l.s4 1983009808
        %v1155 = vunpack.c.0.s8 %v1154
        %v1156 = vlaneseq
        %v1157 = vshrl.u32 %v1156, 7
        %v1158 = vsub.s32 %v1155, %v1157
        %v1159 = vrot.slane %v1145, %v1158
        %v1160 = vcombine.low %v1136, %v1152
        %v1161 = vcombine.high %v1136, %v1152
        %v1163 = vunpack.c.l.s4 1934713408
        %v1164 = vunpack.c.0.s8 %v1163
        %v1165 = vlaneseq
        %v1166 = vshrl.u32 %v1165, 7
        %v1167 = vsub.s32 %v1164, %v1166
        %v1168 = vrot.slane %v1160, %v1167
        %v1170 = vunpack.c.l.s4 1934713408
        %v1171 = vunpack.c.0.s8 %v1170
        %v1172 = vlaneseq
        %v1173 = vshrl.u32 %v1172, 7
        %v1174 = vsub.s32 %v1171, %v1173
        %v1175 = vrot.slane %v1161, %v1174
        %v1176 = vcombine.low %v1143, %v1159
        %v1177 = vcombine.high %v1143, %v1159
        %v1179 = vunpack.c.l.s4 1934713408
        %v1180 = vunpack.c.0.s8 %v1179
        %v1181 = vlaneseq
        %v1182 = vshrl.u32 %v1181, 7
        %v1183 = vsub.s32 %v1180, %v1182
        %v1184 = vrot.slane %v1176, %v1183
        %v1186 = vunpack.c.l.s4 1934713408
        %v1187 = vunpack.c.0.s8 %v1186
        %v1188 = vlaneseq
        %v1189 = vshrl.u32 %v1188, 7
        %v1190 = vsub.s32 %v1187, %v1189
        %v1191 = vrot.slane %v1177, %v1190
        %v1192 = vcombine.high %v1168, 0.0
        %v1193 = vcombine.high %v1175, 0.0
        %v1194 = vcombine.high %v1184, 0.0
        %v1195 = vcombine.high %v1191, 0.0
        %v1196 = vcombine.low %v1100, %v1107
        %v1198 = vunpack.c.l.s4 1983009808
        %v1199 = vunpack.c.0.s8 %v1198
        %v1200 = vlaneseq
        %v1201 = vshrl.u32 %v1200, 7
        %v1202 = vsub.s32 %v1199, %v1201
        %v1203 = vrot.slane %v1196, %v1202
        %v1204 = vcombine.low %v1124, %v1125
        %v1206 = vunpack.c.l.s4 1983009808
        %v1207 = vunpack.c.0.s8 %v1206
        %v1208 = vlaneseq
        %v1209 = vshrl.u32 %v1208, 7
        %v1210 = vsub.s32 %v1207, %v1209
        %v1211 = vrot.slane %v1204, %v1210
        %v1212 = vcombine.low %v1116, %v1123
        %v1214 = vunpack.c.l.s4 1983009808
        %v1215 = vunpack.c.0.s8 %v1214
        %v1216 = vlaneseq
        %v1217 = vshrl.u32 %v1216, 7
        %v1218 = vsub.s32 %v1215, %v1217
        %v1219 = vrot.slane %v1212, %v1218
        %v1220 = vcombine.low %v1126, %v1127
        %v1222 = vunpack.c.l.s4 1983009808
        %v1223 = vunpack.c.0.s8 %v1222
        %v1224 = vlaneseq
        %v1225 = vshrl.u32 %v1224, 7
        %v1226 = vsub.s32 %v1223, %v1225
        %v1227 = vrot.slane %v1220, %v1226
        %v1228 = vcombine.low %v1203, %v1211
        %v1229 = vcombine.high %v1203, %v1211
        %v1231 = vunpack.c.l.s4 1934713408
        %v1232 = vunpack.c.0.s8 %v1231
        %v1233 = vlaneseq
        %v1234 = vshrl.u32 %v1233, 7
        %v1235 = vsub.s32 %v1232, %v1234
        %v1236 = vrot.slane %v1228, %v1235
        %v1238 = vunpack.c.l.s4 1934713408
        %v1239 = vunpack.c.0.s8 %v1238
        %v1240 = vlaneseq
        %v1241 = vshrl.u32 %v1240, 7
        %v1242 = vsub.s32 %v1239, %v1241
        %v1243 = vrot.slane %v1229, %v1242
        %v1244 = vcombine.low %v1219, %v1227
        %v1245 = vcombine.high %v1219, %v1227
        %v1247 = vunpack.c.l.s4 1934713408
        %v1248 = vunpack.c.0.s8 %v1247
        %v1249 = vlaneseq
        %v1250 = vshrl.u32 %v1249, 7
        %v1251 = vsub.s32 %v1248, %v1250
        %v1252 = vrot.slane %v1244, %v1251
        %v1254 = vunpack.c.l.s4 1934713408
        %v1255 = vunpack.c.0.s8 %v1254
        %v1256 = vlaneseq
        %v1257 = vshrl.u32 %v1256, 7
        %v1258 = vsub.s32 %v1255, %v1257
        %v1259 = vrot.slane %v1245, %v1258
        %v1260 = vcombine.low %v1236, %v1252
        %v1261 = vcombine.high %v1236, %v1252
        %v1262 = vcombine.low %v1243, %v1259
        %v1263 = vcombine.high %v1243, %v1259
        %v1264 = vcombine.low %v1168, %v1175
        %v1266 = vunpack.c.l.s4 1983009808
        %v1267 = vunpack.c.0.s8 %v1266
        %v1268 = vlaneseq
        %v1269 = vshrl.u32 %v1268, 7
        %v1270 = vsub.s32 %v1267, %v1269
        %v1271 = vrot.slane %v1264, %v1270
        %v1272 = vcombine.low %v1192, %v1193
        %v1274 = vunpack.c.l.s4 1983009808
        %v1275 = vunpack.c.0.s8 %v1274
        %v1276 = vlaneseq
        %v1277 = vshrl.u32 %v1276, 7
        %v1278 = vsub.s32 %v1275, %v1277
        %v1279 = vrot.slane %v1272, %v1278
        %v1280 = vcombine.low %v1184, %v1191
        %v1282 = vunpack.c.l.s4 1983009808
        %v1283 = vunpack.c.0.s8 %v1282
        %v1284 = vlaneseq
        %v1285 = vshrl.u32 %v1284, 7
        %v1286 = vsub.s32 %v1283, %v1285
        %v1287 = vrot.slane %v1280, %v1286
        %v1288 = vcombine.low %v1194, %v1195
        %v1290 = vunpack.c.l.s4 1983009808
        %v1291 = vunpack.c.0.s8 %v1290
        %v1292 = vlaneseq
        %v1293 = vshrl.u32 %v1292, 7
        %v1294 = vsub.s32 %v1291, %v1293
        %v1295 = vrot.slane %v1288, %v1294
        %v1296 = vcombine.low %v1271, %v1279
        %v1297 = vcombine.high %v1271, %v1279
        %v1299 = vunpack.c.l.s4 1934713408
        %v1300 = vunpack.c.0.s8 %v1299
        %v1301 = vlaneseq
        %v1302 = vshrl.u32 %v1301, 7
        %v1303 = vsub.s32 %v1300, %v1302
        %v1304 = vrot.slane %v1296, %v1303
        %v1306 = vunpack.c.l.s4 1934713408
        %v1307 = vunpack.c.0.s8 %v1306
        %v1308 = vlaneseq
        %v1309 = vshrl.u32 %v1308, 7
        %v1310 = vsub.s32 %v1307, %v1309
        %v1311 = vrot.slane %v1297, %v1310
        %v1312 = vcombine.low %v1287, %v1295
        %v1313 = vcombine.high %v1287, %v1295
        %v1315 = vunpack.c.l.s4 1934713408
        %v1316 = vunpack.c.0.s8 %v1315
        %v1317 = vlaneseq
        %v1318 = vshrl.u32 %v1317, 7
        %v1319 = vsub.s32 %v1316, %v1318
        %v1320 = vrot.slane %v1312, %v1319
        %v1322 = vunpack.c.l.s4 1934713408
        %v1323 = vunpack.c.0.s8 %v1322
        %v1324 = vlaneseq
        %v1325 = vshrl.u32 %v1324, 7
        %v1326 = vsub.s32 %v1323, %v1325
        %v1327 = vrot.slane %v1313, %v1326
        %v1328 = vcombine.low %v1304, %v1320
        %v1329 = vcombine.high %v1304, %v1320
        %v1330 = vcombine.low %v1311, %v1327
        %v1331 = vcombine.high %v1311, %v1327
        %v1332 = vpack.c.bf16 %v1328, %v1260
        %v1333 = vpack.c.bf16 %v1329, %v1261
        %v1334 = vpack.c.bf16 %v1330, %v1262
        %v1335 = vpack.c.bf16 %v1331, %v1263
        %vm1336 = vcmask 261120
        %v1338 = vsel %vm1336, %v1036, 0
        %v1341 = vsel %vm1336, %v1332, 0
        %1343 = vmatprep.subr.bf16.mxu0 0
        %1344 = vmatpush1.bf16.xpose.msra.mxu0 %v1341
        %1345 = vmatprep.subr.bf16.mxu0 0
        %1346 = vmatpush1.bf16.xpose.msra.mxu0 0
        %1347 = vmatprep.subr.bf16.mxu0 0
        %1348 = vmatpush1.bf16.xpose.msra.mxu0 0
        %1349 = vmatprep.subr.bf16.mxu0 0
        %1350 = vmatpush1.bf16.xpose.msra.mxu0 0
        %1351 = vmatprep.subr.bf16.mxu0 0
        %1352 = vmatpush1.bf16.xpose.msra.mxu0 0
        %1353 = vmatprep.subr.bf16.mxu0 0
        %1354 = vmatpush1.bf16.xpose.msra.mxu0 0
        %1355 = vmatprep.subr.bf16.mxu0 0
        %1356 = vmatpush1.bf16.xpose.msra.mxu0 0
        %1357 = vmatprep.subr.bf16.mxu0 0
        %1358 = vmatpush1.bf16.xpose.msra.mxu0 0
        %1359 = vmatprep.subr.bf16.mxu0 0
        %1360 = vmatpush1.bf16.xpose.msra.mxu0 0
        %1361 = vmatprep.subr.bf16.mxu0 0
        %1362 = vmatpush1.bf16.xpose.msra.mxu0 0
        %1363 = vmatprep.subr.bf16.mxu0 0
        %1364 = vmatpush1.bf16.xpose.msra.mxu0 0
        %1365 = vmatprep.subr.bf16.mxu0 0
        %1366 = vmatpush1.bf16.xpose.msra.mxu0 0
        %1367 = vmatprep.subr.bf16.mxu0 0
        %1368 = vmatpush1.bf16.xpose.msra.mxu0 0
        %1369 = vmatprep.subr.bf16.mxu0 0
        %1370 = vmatpush1.bf16.xpose.msra.mxu0 0
        %1371 = vmatprep.subr.bf16.mxu0 0
        %1372 = vmatpush1.bf16.xpose.msra.mxu0 0
        %1373 = vmatprep.subr.bf16.mxu0 0
        %1374 = vmatpush1.bf16.xpose.msra.mxu0 0
        %1375 = vmatprep.mubr.bf16.mxu0 0
        %1376 = vmatmul.mubr.bf16.gmra.mrb[0].mxu0 %v1338
        %v1377 = vpop.f32.mrb[0].mxu0
        %v1378 = vadd.f32 0.0, %v1377
        %v1379 = vpop.f32.mrb[0].mxu0
        %v1380 = vpop.f32.mrb[0].mxu0
        %v1381 = vadd.f32 0.0, %v1380
        %v1382 = vpop.f32.mrb[0].mxu0
        %1383 = vdwg.mxu0
        %v1385 = vsel %vm1336, %v1037, 0
        %1387 = vmatprep.subr.bf16.mxu0 0
        %1388 = vmatpush1.bf16.xpose.msra.mxu0 %v1341
        %1389 = vmatprep.subr.bf16.mxu0 0
        %1390 = vmatpush1.bf16.xpose.msra.mxu0 0
        %1391 = vmatprep.subr.bf16.mxu0 0
        %1392 = vmatpush1.bf16.xpose.msra.mxu0 0
        %1393 = vmatprep.subr.bf16.mxu0 0
        %1394 = vmatpush1.bf16.xpose.msra.mxu0 0
        %1395 = vmatprep.subr.bf16.mxu0 0
        %1396 = vmatpush1.bf16.xpose.msra.mxu0 0
        %1397 = vmatprep.subr.bf16.mxu0 0
        %1398 = vmatpush1.bf16.xpose.msra.mxu0 0
        %1399 = vmatprep.subr.bf16.mxu0 0
        %1400 = vmatpush1.bf16.xpose.msra.mxu0 0
        %1401 = vmatprep.subr.bf16.mxu0 0
        %1402 = vmatpush1.bf16.xpose.msra.mxu0 0
        %1403 = vmatprep.subr.bf16.mxu0 0
        %1404 = vmatpush1.bf16.xpose.msra.mxu0 0
        %1405 = vmatprep.subr.bf16.mxu0 0
        %1406 = vmatpush1.bf16.xpose.msra.mxu0 0
        %1407 = vmatprep.subr.bf16.mxu0 0
        %1408 = vmatpush1.bf16.xpose.msra.mxu0 0
        %1409 = vmatprep.subr.bf16.mxu0 0
        %1410 = vmatpush1.bf16.xpose.msra.mxu0 0
        %1411 = vmatprep.subr.bf16.mxu0 0
        %1412 = vmatpush1.bf16.xpose.msra.mxu0 0
        %1413 = vmatprep.subr.bf16.mxu0 0
        %1414 = vmatpush1.bf16.xpose.msra.mxu0 0
        %1415 = vmatprep.subr.bf16.mxu0 0
        %1416 = vmatpush1.bf16.xpose.msra.mxu0 0
        %1417 = vmatprep.subr.bf16.mxu0 0
        %1418 = vmatpush1.bf16.xpose.msra.mxu0 0
        %1419 = vmatprep.mubr.bf16.mxu0 0
        %1420 = vmatmul.mubr.bf16.gmra.mrb[0].mxu0 %v1385
        %v1421 = vpop.f32.mrb[0].mxu0
        %v1422 = vadd.f32 0.0, %v1421
        %v1423 = vpop.f32.mrb[0].mxu0
        %v1424 = vpop.f32.mrb[0].mxu0
        %v1425 = vadd.f32 0.0, %v1424
        %v1426 = vpop.f32.mrb[0].mxu0
        %1427 = vdwg.mxu0
        %v1429 = vsel %vm1336, %v1038, 0
        %v1432 = vsel %vm1336, %v1333, 0
        %1434 = vmatprep.subr.bf16.mxu0 0
        %1435 = vmatpush1.bf16.xpose.msra.mxu0 %v1432
        %1436 = vmatprep.subr.bf16.mxu0 0
        %1437 = vmatpush1.bf16.xpose.msra.mxu0 0
        %1438 = vmatprep.subr.bf16.mxu0 0
        %1439 = vmatpush1.bf16.xpose.msra.mxu0 0
        %1440 = vmatprep.subr.bf16.mxu0 0
        %1441 = vmatpush1.bf16.xpose.msra.mxu0 0
        %1442 = vmatprep.subr.bf16.mxu0 0
        %1443 = vmatpush1.bf16.xpose.msra.mxu0 0
        %1444 = vmatprep.subr.bf16.mxu0 0
        %1445 = vmatpush1.bf16.xpose.msra.mxu0 0
        %1446 = vmatprep.subr.bf16.mxu0 0
        %1447 = vmatpush1.bf16.xpose.msra.mxu0 0
        %1448 = vmatprep.subr.bf16.mxu0 0
        %1449 = vmatpush1.bf16.xpose.msra.mxu0 0
        %1450 = vmatprep.subr.bf16.mxu0 0
        %1451 = vmatpush1.bf16.xpose.msra.mxu0 0
        %1452 = vmatprep.subr.bf16.mxu0 0
        %1453 = vmatpush1.bf16.xpose.msra.mxu0 0
        %1454 = vmatprep.subr.bf16.mxu0 0
        %1455 = vmatpush1.bf16.xpose.msra.mxu0 0
        %1456 = vmatprep.subr.bf16.mxu0 0
        %1457 = vmatpush1.bf16.xpose.msra.mxu0 0
        %1458 = vmatprep.subr.bf16.mxu0 0
        %1459 = vmatpush1.bf16.xpose.msra.mxu0 0
        %1460 = vmatprep.subr.bf16.mxu0 0
        %1461 = vmatpush1.bf16.xpose.msra.mxu0 0
        %1462 = vmatprep.subr.bf16.mxu0 0
        %1463 = vmatpush1.bf16.xpose.msra.mxu0 0
        %1464 = vmatprep.subr.bf16.mxu0 0
        %1465 = vmatpush1.bf16.xpose.msra.mxu0 0
        %1466 = vmatprep.mubr.bf16.mxu0 0
        %1467 = vmatmul.mubr.bf16.gmra.mrb[0].mxu0 %v1429
        %v1468 = vpop.f32.mrb[0].mxu0
        %v1469 = vadd.f32 0.0, %v1468
        %v1470 = vpop.f32.mrb[0].mxu0
        %v1471 = vpop.f32.mrb[0].mxu0
        %v1472 = vadd.f32 0.0, %v1471
        %v1473 = vpop.f32.mrb[0].mxu0
        %1474 = vdwg.mxu0
        %v1476 = vsel %vm1336, %v1039, 0
        %1478 = vmatprep.subr.bf16.mxu0 0
        %1479 = vmatpush1.bf16.xpose.msra.mxu0 %v1432
        %1480 = vmatprep.subr.bf16.mxu0 0
        %1481 = vmatpush1.bf16.xpose.msra.mxu0 0
        %1482 = vmatprep.subr.bf16.mxu0 0
        %1483 = vmatpush1.bf16.xpose.msra.mxu0 0
        %1484 = vmatprep.subr.bf16.mxu0 0
        %1485 = vmatpush1.bf16.xpose.msra.mxu0 0
        %1486 = vmatprep.subr.bf16.mxu0 0
        %1487 = vmatpush1.bf16.xpose.msra.mxu0 0
        %1488 = vmatprep.subr.bf16.mxu0 0
        %1489 = vmatpush1.bf16.xpose.msra.mxu0 0
        %1490 = vmatprep.subr.bf16.mxu0 0
        %1491 = vmatpush1.bf16.xpose.msra.mxu0 0
        %1492 = vmatprep.subr.bf16.mxu0 0
        %1493 = vmatpush1.bf16.xpose.msra.mxu0 0
        %1494 = vmatprep.subr.bf16.mxu0 0
        %1495 = vmatpush1.bf16.xpose.msra.mxu0 0
        %1496 = vmatprep.subr.bf16.mxu0 0
        %1497 = vmatpush1.bf16.xpose.msra.mxu0 0
        %1498 = vmatprep.subr.bf16.mxu0 0
        %1499 = vmatpush1.bf16.xpose.msra.mxu0 0
        %1500 = vmatprep.subr.bf16.mxu0 0
        %1501 = vmatpush1.bf16.xpose.msra.mxu0 0
        %1502 = vmatprep.subr.bf16.mxu0 0
        %1503 = vmatpush1.bf16.xpose.msra.mxu0 0
        %1504 = vmatprep.subr.bf16.mxu0 0
        %1505 = vmatpush1.bf16.xpose.msra.mxu0 0
        %1506 = vmatprep.subr.bf16.mxu0 0
        %1507 = vmatpush1.bf16.xpose.msra.mxu0 0
        %1508 = vmatprep.subr.bf16.mxu0 0
        %1509 = vmatpush1.bf16.xpose.msra.mxu0 0
        %1510 = vmatprep.mubr.bf16.mxu0 0
        %1511 = vmatmul.mubr.bf16.gmra.mrb[0].mxu0 %v1476
        %v1512 = vpop.f32.mrb[0].mxu0
        %v1513 = vadd.f32 0.0, %v1512
        %v1514 = vpop.f32.mrb[0].mxu0
        %v1515 = vpop.f32.mrb[0].mxu0
        %v1516 = vadd.f32 0.0, %v1515
        %v1517 = vpop.f32.mrb[0].mxu0
        %1518 = vdwg.mxu0
        %v1519 = vlaneseq
        %v1520 = vshrl.u32 %v1519, 7
        %v1521 = vadd.s32 %v1520, 8
        %v1522 = vstv %s484
        %v1523 = vadd.s32 %v1522, %v1520
        %v1524 = vadd.s32 %v1522, %v1521
        %v1525 = vlaneseq
        %v1526 = vand.u32 %v1525, 127
        %vm1527 = vcmp.ge.s32.totalorder %v1523, %v1526
        %vm1528 = vcmp.ge.s32.totalorder %v1524, %v1526
        %v1529 = vsel %vm1527, 1, 0
        %v1530 = vsel %vm1528, 1, 0
        %vm1531 = vcmp.eq.s32.totalorder %v1529, 1
        %vm1532 = vcmp.eq.s32.totalorder %v1530, 1
        %v1533 = vsel %vm1531, %v1378, -inf
        %v1534 = vsel %vm1532, %v1381, -inf
        %v1535 = vsel %vm1531, %v1422, -inf
        %v1536 = vsel %vm1532, %v1425, -inf
        %v1537 = vsel %vm1531, %v1469, -inf
        %v1538 = vsel %vm1532, %v1472, -inf
        %v1539 = vsel %vm1531, %v1513, -inf
        %v1540 = vsel %vm1532, %v1516, -inf
        %vm1541 = vcmask 130048
        %v1542 = vsel %vm1541, %v1533, -inf
        %1543 = vmax.xlane.f32.xlu0 %v1542
        %v1544 = vpop.xlane.xlu0 %1543
        %v1545 = vsel %vm1541, %v1534, -inf
        %1546 = vmax.xlane.f32.xlu0 %v1545
        %v1547 = vpop.xlane.xlu0 %1546
        %v1548 = vsel %vm1541, %v1535, -inf
        %1549 = vmax.xlane.f32.xlu0 %v1548
        %v1550 = vpop.xlane.xlu0 %1549
        %v1551 = vsel %vm1541, %v1536, -inf
        %1552 = vmax.xlane.f32.xlu0 %v1551
        %v1553 = vpop.xlane.xlu0 %1552
        %v1554 = vsel %vm1541, %v1537, -inf
        %1555 = vmax.xlane.f32.xlu0 %v1554
        %v1556 = vpop.xlane.xlu0 %1555
        %v1557 = vsel %vm1541, %v1538, -inf
        %1558 = vmax.xlane.f32.xlu0 %v1557
        %v1559 = vpop.xlane.xlu0 %1558
        %v1560 = vsel %vm1541, %v1539, -inf
        %1561 = vmax.xlane.f32.xlu0 %v1560
        %v1562 = vpop.xlane.xlu0 %1561
        %v1563 = vsel %vm1541, %v1540, -inf
        %1564 = vmax.xlane.f32.xlu0 %v1563
        %v1565 = vpop.xlane.xlu0 %1564
        %v1566 = vsub.f32 %v1533, %v1544
        %v1567 = vsub.f32 %v1534, %v1547
        %v1568 = vsub.f32 %v1535, %v1550
        %v1569 = vsub.f32 %v1536, %v1553
        %v1570 = vsub.f32 %v1537, %v1556
        %v1571 = vsub.f32 %v1538, %v1559
        %v1572 = vsub.f32 %v1539, %v1562
        %v1573 = vsub.f32 %v1540, %v1565
        %v1574 = vmul.f32 %v1566, 1.442695
        %v1575 = vpow.pop %v1574
        %v1576 = vmul.f32 %v1567, 1.442695
        %v1577 = vpow.pop %v1576
        %v1578 = vmul.f32 %v1568, 1.442695
        %v1579 = vpow.pop %v1578
        %v1580 = vmul.f32 %v1569, 1.442695
        %v1581 = vpow.pop %v1580
        %v1582 = vmul.f32 %v1570, 1.442695
        %v1583 = vpow.pop %v1582
        %v1584 = vmul.f32 %v1571, 1.442695
        %v1585 = vpow.pop %v1584
        %v1586 = vmul.f32 %v1572, 1.442695
        %v1587 = vpow.pop %v1586
        %v1588 = vmul.f32 %v1573, 1.442695
        %v1589 = vpow.pop %v1588
        %v1590 = vsel %vm1541, %v1575, 0.0
        %1591 = vadd.xlane.f32.xlu0 %v1590
        %v1592 = vpop.xlane.xlu0 %1591
        %v1593 = vsel %vm1541, %v1577, 0.0
        %1594 = vadd.xlane.f32.xlu0 %v1593
        %v1595 = vpop.xlane.xlu0 %1594
        %v1596 = vsel %vm1541, %v1579, 0.0
        %1597 = vadd.xlane.f32.xlu0 %v1596
        %v1598 = vpop.xlane.xlu0 %1597
        %v1599 = vsel %vm1541, %v1581, 0.0
        %1600 = vadd.xlane.f32.xlu0 %v1599
        %v1601 = vpop.xlane.xlu0 %1600
        %v1602 = vsel %vm1541, %v1583, 0.0
        %1603 = vadd.xlane.f32.xlu0 %v1602
        %v1604 = vpop.xlane.xlu0 %1603
        %v1605 = vsel %vm1541, %v1585, 0.0
        %1606 = vadd.xlane.f32.xlu0 %v1605
        %v1607 = vpop.xlane.xlu0 %1606
        %v1608 = vsel %vm1541, %v1587, 0.0
        %1609 = vadd.xlane.f32.xlu0 %v1608
        %v1610 = vpop.xlane.xlu0 %1609
        %v1611 = vsel %vm1541, %v1589, 0.0
        %1612 = vadd.xlane.f32.xlu0 %v1611
        %v1613 = vpop.xlane.xlu0 %1612
        %v1614 = vrcp.pop %v1592
        %v1615 = vrcp.pop %v1595
        %v1616 = vrcp.pop %v1598
        %v1617 = vrcp.pop %v1601
        %v1618 = vrcp.pop %v1604
        %v1619 = vrcp.pop %v1607
        %v1620 = vrcp.pop %v1610
        %v1621 = vrcp.pop %v1613
        %v1622 = vmul.f32 %v1575, %v1614
        %v1623 = vmul.f32 %v1577, %v1615
        %v1624 = vmul.f32 %v1579, %v1616
        %v1625 = vmul.f32 %v1581, %v1617
        %v1626 = vmul.f32 %v1583, %v1618
        %v1627 = vmul.f32 %v1585, %v1619
        %v1628 = vmul.f32 %v1587, %v1620
        %v1629 = vmul.f32 %v1589, %v1621
        %v1630 = vpack.c.bf16 %v1623, %v1622
        %v1631 = vpack.c.bf16 %v1625, %v1624
        %v1632 = vpack.c.bf16 %v1627, %v1626
        %v1633 = vpack.c.bf16 %v1629, %v1628
        %v1635 = vsel %vm1541, %v1630, 0
        %1637 = vmatprep.subr.bf16.mxu0 0
        %1638 = vmatpush1.bf16.msra.mxu0 %v1334
        %1639 = vmatprep.subr.bf16.mxu0 0
        %1640 = vmatpush1.bf16.msra.mxu0 0
        %1641 = vmatprep.subr.bf16.mxu0 0
        %1642 = vmatpush1.bf16.msra.mxu0 0
        %1643 = vmatprep.subr.bf16.mxu0 0
        %1644 = vmatpush1.bf16.msra.mxu0 0
        %1645 = vmatprep.subr.bf16.mxu0 0
        %1646 = vmatpush1.bf16.msra.mxu0 0
        %1647 = vmatprep.subr.bf16.mxu0 0
        %1648 = vmatpush1.bf16.msra.mxu0 0
        %1649 = vmatprep.subr.bf16.mxu0 0
        %1650 = vmatpush1.bf16.msra.mxu0 0
        %1651 = vmatprep.subr.bf16.mxu0 0
        %1652 = vmatpush1.bf16.msra.mxu0 0
        %1653 = vmatprep.subr.bf16.mxu0 0
        %1654 = vmatpush1.bf16.msra.mxu0 0
        %1655 = vmatprep.subr.bf16.mxu0 0
        %1656 = vmatpush1.bf16.msra.mxu0 0
        %1657 = vmatprep.subr.bf16.mxu0 0
        %1658 = vmatpush1.bf16.msra.mxu0 0
        %1659 = vmatprep.subr.bf16.mxu0 0
        %1660 = vmatpush1.bf16.msra.mxu0 0
        %1661 = vmatprep.subr.bf16.mxu0 0
        %1662 = vmatpush1.bf16.msra.mxu0 0
        %1663 = vmatprep.subr.bf16.mxu0 0
        %1664 = vmatpush1.bf16.msra.mxu0 0
        %1665 = vmatprep.subr.bf16.mxu0 0
        %1666 = vmatpush1.bf16.msra.mxu0 0
        %1667 = vmatprep.subr.bf16.mxu0 0
        %1668 = vmatpush1.bf16.msra.mxu0 0
        %1669 = vmatprep.mubr.bf16.mxu0 0
        %1670 = vmatmul.mubr.bf16.gmra.mrb[0].mxu0 %v1635
        %v1671 = vpop.f32.mrb[0].mxu0
        %v1672 = vadd.f32 0.0, %v1671
        %v1673 = vpop.f32.mrb[0].mxu0
        %v1674 = vpop.f32.mrb[0].mxu0
        %v1675 = vadd.f32 0.0, %v1674
        %v1676 = vpop.f32.mrb[0].mxu0
        %1677 = vdwg.mxu0
        %v1679 = vsel %vm1541, %v1631, 0
        %1681 = vmatprep.subr.bf16.mxu0 0
        %1682 = vmatpush1.bf16.msra.mxu0 %v1334
        %1683 = vmatprep.subr.bf16.mxu0 0
        %1684 = vmatpush1.bf16.msra.mxu0 0
        %1685 = vmatprep.subr.bf16.mxu0 0
        %1686 = vmatpush1.bf16.msra.mxu0 0
        %1687 = vmatprep.subr.bf16.mxu0 0
        %1688 = vmatpush1.bf16.msra.mxu0 0
        %1689 = vmatprep.subr.bf16.mxu0 0
        %1690 = vmatpush1.bf16.msra.mxu0 0
        %1691 = vmatprep.subr.bf16.mxu0 0
        %1692 = vmatpush1.bf16.msra.mxu0 0
        %1693 = vmatprep.subr.bf16.mxu0 0
        %1694 = vmatpush1.bf16.msra.mxu0 0
        %1695 = vmatprep.subr.bf16.mxu0 0
        %1696 = vmatpush1.bf16.msra.mxu0 0
        %1697 = vmatprep.subr.bf16.mxu0 0
        %1698 = vmatpush1.bf16.msra.mxu0 0
        %1699 = vmatprep.subr.bf16.mxu0 0
        %1700 = vmatpush1.bf16.msra.mxu0 0
        %1701 = vmatprep.subr.bf16.mxu0 0
        %1702 = vmatpush1.bf16.msra.mxu0 0
        %1703 = vmatprep.subr.bf16.mxu0 0
        %1704 = vmatpush1.bf16.msra.mxu0 0
        %1705 = vmatprep.subr.bf16.mxu0 0
        %1706 = vmatpush1.bf16.msra.mxu0 0
        %1707 = vmatprep.subr.bf16.mxu0 0
        %1708 = vmatpush1.bf16.msra.mxu0 0
        %1709 = vmatprep.subr.bf16.mxu0 0
        %1710 = vmatpush1.bf16.msra.mxu0 0
        %1711 = vmatprep.subr.bf16.mxu0 0
        %1712 = vmatpush1.bf16.msra.mxu0 0
        %1713 = vmatprep.mubr.bf16.mxu0 0
        %1714 = vmatmul.mubr.bf16.gmra.mrb[0].mxu0 %v1679
        %v1715 = vpop.f32.mrb[0].mxu0
        %v1716 = vadd.f32 0.0, %v1715
        %v1717 = vpop.f32.mrb[0].mxu0
        %v1718 = vpop.f32.mrb[0].mxu0
        %v1719 = vadd.f32 0.0, %v1718
        %v1720 = vpop.f32.mrb[0].mxu0
        %1721 = vdwg.mxu0
        %v1723 = vsel %vm1541, %v1632, 0
        %1725 = vmatprep.subr.bf16.mxu0 0
        %1726 = vmatpush1.bf16.msra.mxu0 %v1335
        %1727 = vmatprep.subr.bf16.mxu0 0
        %1728 = vmatpush1.bf16.msra.mxu0 0
        %1729 = vmatprep.subr.bf16.mxu0 0
        %1730 = vmatpush1.bf16.msra.mxu0 0
        %1731 = vmatprep.subr.bf16.mxu0 0
        %1732 = vmatpush1.bf16.msra.mxu0 0
        %1733 = vmatprep.subr.bf16.mxu0 0
        %1734 = vmatpush1.bf16.msra.mxu0 0
        %1735 = vmatprep.subr.bf16.mxu0 0
        %1736 = vmatpush1.bf16.msra.mxu0 0
        %1737 = vmatprep.subr.bf16.mxu0 0
        %1738 = vmatpush1.bf16.msra.mxu0 0
        %1739 = vmatprep.subr.bf16.mxu0 0
        %1740 = vmatpush1.bf16.msra.mxu0 0
        %1741 = vmatprep.subr.bf16.mxu0 0
        %1742 = vmatpush1.bf16.msra.mxu0 0
        %1743 = vmatprep.subr.bf16.mxu0 0
        %1744 = vmatpush1.bf16.msra.mxu0 0
        %1745 = vmatprep.subr.bf16.mxu0 0
        %1746 = vmatpush1.bf16.msra.mxu0 0
        %1747 = vmatprep.subr.bf16.mxu0 0
        %1748 = vmatpush1.bf16.msra.mxu0 0
        %1749 = vmatprep.subr.bf16.mxu0 0
        %1750 = vmatpush1.bf16.msra.mxu0 0
        %1751 = vmatprep.subr.bf16.mxu0 0
        %1752 = vmatpush1.bf16.msra.mxu0 0
        %1753 = vmatprep.subr.bf16.mxu0 0
        %1754 = vmatpush1.bf16.msra.mxu0 0
        %1755 = vmatprep.subr.bf16.mxu0 0
        %1756 = vmatpush1.bf16.msra.mxu0 0
        %1757 = vmatprep.mubr.bf16.mxu0 0
        %1758 = vmatmul.mubr.bf16.gmra.mrb[0].mxu0 %v1723
        %v1759 = vpop.f32.mrb[0].mxu0
        %v1760 = vadd.f32 0.0, %v1759
        %v1761 = vpop.f32.mrb[0].mxu0
        %v1762 = vpop.f32.mrb[0].mxu0
        %v1763 = vadd.f32 0.0, %v1762
        %v1764 = vpop.f32.mrb[0].mxu0
        %1765 = vdwg.mxu0
        %v1767 = vsel %vm1541, %v1633, 0
        %1769 = vmatprep.subr.bf16.mxu0 0
        %1770 = vmatpush1.bf16.msra.mxu0 %v1335
        %1771 = vmatprep.subr.bf16.mxu0 0
        %1772 = vmatpush1.bf16.msra.mxu0 0
        %1773 = vmatprep.subr.bf16.mxu0 0
        %1774 = vmatpush1.bf16.msra.mxu0 0
        %1775 = vmatprep.subr.bf16.mxu0 0
        %1776 = vmatpush1.bf16.msra.mxu0 0
        %1777 = vmatprep.subr.bf16.mxu0 0
        %1778 = vmatpush1.bf16.msra.mxu0 0
        %1779 = vmatprep.subr.bf16.mxu0 0
        %1780 = vmatpush1.bf16.msra.mxu0 0
        %1781 = vmatprep.subr.bf16.mxu0 0
        %1782 = vmatpush1.bf16.msra.mxu0 0
        %1783 = vmatprep.subr.bf16.mxu0 0
        %1784 = vmatpush1.bf16.msra.mxu0 0
        %1785 = vmatprep.subr.bf16.mxu0 0
        %1786 = vmatpush1.bf16.msra.mxu0 0
        %1787 = vmatprep.subr.bf16.mxu0 0
        %1788 = vmatpush1.bf16.msra.mxu0 0
        %1789 = vmatprep.subr.bf16.mxu0 0
        %1790 = vmatpush1.bf16.msra.mxu0 0
        %1791 = vmatprep.subr.bf16.mxu0 0
        %1792 = vmatpush1.bf16.msra.mxu0 0
        %1793 = vmatprep.subr.bf16.mxu0 0
        %1794 = vmatpush1.bf16.msra.mxu0 0
        %1795 = vmatprep.subr.bf16.mxu0 0
        %1796 = vmatpush1.bf16.msra.mxu0 0
        %1797 = vmatprep.subr.bf16.mxu0 0
        %1798 = vmatpush1.bf16.msra.mxu0 0
        %1799 = vmatprep.subr.bf16.mxu0 0
        %1800 = vmatpush1.bf16.msra.mxu0 0
        %1801 = vmatprep.mubr.bf16.mxu0 0
        %1802 = vmatmul.mubr.bf16.gmra.mrb[0].mxu0 %v1767
        %v1803 = vpop.f32.mrb[0].mxu0
        %v1804 = vadd.f32 0.0, %v1803
        %v1805 = vpop.f32.mrb[0].mxu0
        %v1806 = vpop.f32.mrb[0].mxu0
        %v1807 = vadd.f32 0.0, %v1806
        %v1808 = vpop.f32.mrb[0].mxu0
        %1809 = vdwg.mxu0
        %v1810 = vcombine.low %v1672, %v1760
        %v1811 = vcombine.high %v1672, %v1760
        %v1813 = vunpack.c.l.s4 1983009808
        %v1814 = vunpack.c.0.s8 %v1813
        %v1815 = vlaneseq
        %v1816 = vshrl.u32 %v1815, 7
        %v1817 = vsub.s32 %v1814, %v1816
        %v1818 = vrot.slane %v1810, %v1817
        %v1820 = vunpack.c.l.s4 1983009808
        %v1821 = vunpack.c.0.s8 %v1820
        %v1822 = vlaneseq
        %v1823 = vshrl.u32 %v1822, 7
        %v1824 = vsub.s32 %v1821, %v1823
        %v1825 = vrot.slane %v1811, %v1824
        %v1826 = vcombine.low %v1716, %v1804
        %v1827 = vcombine.high %v1716, %v1804
        %v1829 = vunpack.c.l.s4 1983009808
        %v1830 = vunpack.c.0.s8 %v1829
        %v1831 = vlaneseq
        %v1832 = vshrl.u32 %v1831, 7
        %v1833 = vsub.s32 %v1830, %v1832
        %v1834 = vrot.slane %v1826, %v1833
        %v1836 = vunpack.c.l.s4 1983009808
        %v1837 = vunpack.c.0.s8 %v1836
        %v1838 = vlaneseq
        %v1839 = vshrl.u32 %v1838, 7
        %v1840 = vsub.s32 %v1837, %v1839
        %v1841 = vrot.slane %v1827, %v1840
        %v1842 = vcombine.low %v1818, %v1834
        %v1843 = vcombine.high %v1818, %v1834
        %v1845 = vunpack.c.l.s4 1934713408
        %v1846 = vunpack.c.0.s8 %v1845
        %v1847 = vlaneseq
        %v1848 = vshrl.u32 %v1847, 7
        %v1849 = vsub.s32 %v1846, %v1848
        %v1850 = vrot.slane %v1842, %v1849
        %v1852 = vunpack.c.l.s4 1934713408
        %v1853 = vunpack.c.0.s8 %v1852
        %v1854 = vlaneseq
        %v1855 = vshrl.u32 %v1854, 7
        %v1856 = vsub.s32 %v1853, %v1855
        %v1857 = vrot.slane %v1843, %v1856
        %v1858 = vcombine.low %v1825, %v1841
        %v1859 = vcombine.high %v1825, %v1841
        %v1861 = vunpack.c.l.s4 1934713408
        %v1862 = vunpack.c.0.s8 %v1861
        %v1863 = vlaneseq
        %v1864 = vshrl.u32 %v1863, 7
        %v1865 = vsub.s32 %v1862, %v1864
        %v1866 = vrot.slane %v1858, %v1865
        %v1868 = vunpack.c.l.s4 1934713408
        %v1869 = vunpack.c.0.s8 %v1868
        %v1870 = vlaneseq
        %v1871 = vshrl.u32 %v1870, 7
        %v1872 = vsub.s32 %v1869, %v1871
        %v1873 = vrot.slane %v1859, %v1872
        %v1874 = vcombine.high %v1850, 0.0
        %v1875 = vcombine.high %v1857, 0.0
        %v1876 = vcombine.high %v1866, 0.0
        %v1877 = vcombine.high %v1873, 0.0
        %v1878 = vcombine.low %v1675, %v1763
        %v1879 = vcombine.high %v1675, %v1763
        %v1881 = vunpack.c.l.s4 1983009808
        %v1882 = vunpack.c.0.s8 %v1881
        %v1883 = vlaneseq
        %v1884 = vshrl.u32 %v1883, 7
        %v1885 = vsub.s32 %v1882, %v1884
        %v1886 = vrot.slane %v1878, %v1885
        %v1888 = vunpack.c.l.s4 1983009808
        %v1889 = vunpack.c.0.s8 %v1888
        %v1890 = vlaneseq
        %v1891 = vshrl.u32 %v1890, 7
        %v1892 = vsub.s32 %v1889, %v1891
        %v1893 = vrot.slane %v1879, %v1892
        %v1894 = vcombine.low %v1719, %v1807
        %v1895 = vcombine.high %v1719, %v1807
        %v1897 = vunpack.c.l.s4 1983009808
        %v1898 = vunpack.c.0.s8 %v1897
        %v1899 = vlaneseq
        %v1900 = vshrl.u32 %v1899, 7
        %v1901 = vsub.s32 %v1898, %v1900
        %v1902 = vrot.slane %v1894, %v1901
        %v1904 = vunpack.c.l.s4 1983009808
        %v1905 = vunpack.c.0.s8 %v1904
        %v1906 = vlaneseq
        %v1907 = vshrl.u32 %v1906, 7
        %v1908 = vsub.s32 %v1905, %v1907
        %v1909 = vrot.slane %v1895, %v1908
        %v1910 = vcombine.low %v1886, %v1902
        %v1911 = vcombine.high %v1886, %v1902
        %v1913 = vunpack.c.l.s4 1934713408
        %v1914 = vunpack.c.0.s8 %v1913
        %v1915 = vlaneseq
        %v1916 = vshrl.u32 %v1915, 7
        %v1917 = vsub.s32 %v1914, %v1916
        %v1918 = vrot.slane %v1910, %v1917
        %v1920 = vunpack.c.l.s4 1934713408
        %v1921 = vunpack.c.0.s8 %v1920
        %v1922 = vlaneseq
        %v1923 = vshrl.u32 %v1922, 7
        %v1924 = vsub.s32 %v1921, %v1923
        %v1925 = vrot.slane %v1911, %v1924
        %v1926 = vcombine.low %v1893, %v1909
        %v1927 = vcombine.high %v1893, %v1909
        %v1929 = vunpack.c.l.s4 1934713408
        %v1930 = vunpack.c.0.s8 %v1929
        %v1931 = vlaneseq
        %v1932 = vshrl.u32 %v1931, 7
        %v1933 = vsub.s32 %v1930, %v1932
        %v1934 = vrot.slane %v1926, %v1933
        %v1936 = vunpack.c.l.s4 1934713408
        %v1937 = vunpack.c.0.s8 %v1936
        %v1938 = vlaneseq
        %v1939 = vshrl.u32 %v1938, 7
        %v1940 = vsub.s32 %v1937, %v1939
        %v1941 = vrot.slane %v1927, %v1940
        %v1942 = vcombine.high %v1918, 0.0
        %v1943 = vcombine.high %v1925, 0.0
        %v1944 = vcombine.high %v1934, 0.0
        %v1945 = vcombine.high %v1941, 0.0
        %v1946 = vcombine.low %v1850, %v1857
        %v1948 = vunpack.c.l.s4 1983009808
        %v1949 = vunpack.c.0.s8 %v1948
        %v1950 = vlaneseq
        %v1951 = vshrl.u32 %v1950, 7
        %v1952 = vsub.s32 %v1949, %v1951
        %v1953 = vrot.slane %v1946, %v1952
        %v1954 = vcombine.low %v1874, %v1875
        %v1956 = vunpack.c.l.s4 1983009808
        %v1957 = vunpack.c.0.s8 %v1956
        %v1958 = vlaneseq
        %v1959 = vshrl.u32 %v1958, 7
        %v1960 = vsub.s32 %v1957, %v1959
        %v1961 = vrot.slane %v1954, %v1960
        %v1962 = vcombine.low %v1866, %v1873
        %v1964 = vunpack.c.l.s4 1983009808
        %v1965 = vunpack.c.0.s8 %v1964
        %v1966 = vlaneseq
        %v1967 = vshrl.u32 %v1966, 7
        %v1968 = vsub.s32 %v1965, %v1967
        %v1969 = vrot.slane %v1962, %v1968
        %v1970 = vcombine.low %v1876, %v1877
        %v1972 = vunpack.c.l.s4 1983009808
        %v1973 = vunpack.c.0.s8 %v1972
        %v1974 = vlaneseq
        %v1975 = vshrl.u32 %v1974, 7
        %v1976 = vsub.s32 %v1973, %v1975
        %v1977 = vrot.slane %v1970, %v1976
        %v1978 = vcombine.low %v1953, %v1961
        %v1979 = vcombine.high %v1953, %v1961
        %v1981 = vunpack.c.l.s4 1934713408
        %v1982 = vunpack.c.0.s8 %v1981
        %v1983 = vlaneseq
        %v1984 = vshrl.u32 %v1983, 7
        %v1985 = vsub.s32 %v1982, %v1984
        %v1986 = vrot.slane %v1978, %v1985
        %v1988 = vunpack.c.l.s4 1934713408
        %v1989 = vunpack.c.0.s8 %v1988
        %v1990 = vlaneseq
        %v1991 = vshrl.u32 %v1990, 7
        %v1992 = vsub.s32 %v1989, %v1991
        %v1993 = vrot.slane %v1979, %v1992
        %v1994 = vcombine.low %v1969, %v1977
        %v1995 = vcombine.high %v1969, %v1977
        %v1997 = vunpack.c.l.s4 1934713408
        %v1998 = vunpack.c.0.s8 %v1997
        %v1999 = vlaneseq
        %v2000 = vshrl.u32 %v1999, 7
        %v2001 = vsub.s32 %v1998, %v2000
        %v2002 = vrot.slane %v1994, %v2001
        %v2004 = vunpack.c.l.s4 1934713408
        %v2005 = vunpack.c.0.s8 %v2004
        %v2006 = vlaneseq
        %v2007 = vshrl.u32 %v2006, 7
        %v2008 = vsub.s32 %v2005, %v2007
        %v2009 = vrot.slane %v1995, %v2008
        %v2010 = vcombine.low %v1986, %v2002
        %v2011 = vcombine.high %v1986, %v2002
        %v2012 = vcombine.low %v1993, %v2009
        %v2013 = vcombine.high %v1993, %v2009
        %v2014 = vcombine.low %v1918, %v1925
        %v2016 = vunpack.c.l.s4 1983009808
        %v2017 = vunpack.c.0.s8 %v2016
        %v2018 = vlaneseq
        %v2019 = vshrl.u32 %v2018, 7
        %v2020 = vsub.s32 %v2017, %v2019
        %v2021 = vrot.slane %v2014, %v2020
        %v2022 = vcombine.low %v1942, %v1943
        %v2024 = vunpack.c.l.s4 1983009808
        %v2025 = vunpack.c.0.s8 %v2024
        %v2026 = vlaneseq
        %v2027 = vshrl.u32 %v2026, 7
        %v2028 = vsub.s32 %v2025, %v2027
        %v2029 = vrot.slane %v2022, %v2028
        %v2030 = vcombine.low %v1934, %v1941
        %v2032 = vunpack.c.l.s4 1983009808
        %v2033 = vunpack.c.0.s8 %v2032
        %v2034 = vlaneseq
        %v2035 = vshrl.u32 %v2034, 7
        %v2036 = vsub.s32 %v2033, %v2035
        %v2037 = vrot.slane %v2030, %v2036
        %v2038 = vcombine.low %v1944, %v1945
        %v2040 = vunpack.c.l.s4 1983009808
        %v2041 = vunpack.c.0.s8 %v2040
        %v2042 = vlaneseq
        %v2043 = vshrl.u32 %v2042, 7
        %v2044 = vsub.s32 %v2041, %v2043
        %v2045 = vrot.slane %v2038, %v2044
        %v2046 = vcombine.low %v2021, %v2029
        %v2047 = vcombine.high %v2021, %v2029
        %v2049 = vunpack.c.l.s4 1934713408
        %v2050 = vunpack.c.0.s8 %v2049
        %v2051 = vlaneseq
        %v2052 = vshrl.u32 %v2051, 7
        %v2053 = vsub.s32 %v2050, %v2052
        %v2054 = vrot.slane %v2046, %v2053
        %v2056 = vunpack.c.l.s4 1934713408
        %v2057 = vunpack.c.0.s8 %v2056
        %v2058 = vlaneseq
        %v2059 = vshrl.u32 %v2058, 7
        %v2060 = vsub.s32 %v2057, %v2059
        %v2061 = vrot.slane %v2047, %v2060
        %v2062 = vcombine.low %v2037, %v2045
        %v2063 = vcombine.high %v2037, %v2045
        %v2065 = vunpack.c.l.s4 1934713408
        %v2066 = vunpack.c.0.s8 %v2065
        %v2067 = vlaneseq
        %v2068 = vshrl.u32 %v2067, 7
        %v2069 = vsub.s32 %v2066, %v2068
        %v2070 = vrot.slane %v2062, %v2069
        %v2072 = vunpack.c.l.s4 1934713408
        %v2073 = vunpack.c.0.s8 %v2072
        %v2074 = vlaneseq
        %v2075 = vshrl.u32 %v2074, 7
        %v2076 = vsub.s32 %v2073, %v2075
        %v2077 = vrot.slane %v2063, %v2076
        %v2078 = vcombine.low %v2054, %v2070
        %v2079 = vcombine.high %v2054, %v2070
        %v2080 = vcombine.low %v2061, %v2077
        %v2081 = vcombine.high %v2061, %v2077
        %2084 = vrot.lane.b32.xlu0 %v2011, 32
        %v2085 = vpop.permute.xlu0 %2084
        %2086 = vrot.lane.b32.xlu0 %v2079, 32
        %v2087 = vpop.permute.xlu0 %2086
        %2092 = vrot.lane.b32.xlu0 %v2012, 64
        %v2093 = vpop.permute.xlu0 %2092
        %2094 = vrot.lane.b32.xlu0 %v2080, 64
        %v2095 = vpop.permute.xlu0 %2094
        %2100 = vrot.lane.b32.xlu0 %v2013, 96
        %v2101 = vpop.permute.xlu0 %2100
        %2102 = vrot.lane.b32.xlu0 %v2081, 96
        %v2103 = vpop.permute.xlu0 %2102
        %v2106 = vsel %vm1336, %v2010, %v2085
        %v2107 = vsel %vm1336, %v2078, %v2087
        %vm2108 = vcmask 523264
        %v2109 = vsel %vm2108, %v2106, %v2093
        %v2110 = vsel %vm2108, %v2107, %v2095
        %vm2111 = vcmask 785408
        %v2112 = vsel %vm2111, %v2109, %v2101
        %v2113 = vsel %vm2111, %v2110, %v2103
        %v2114 = vpack.c.bf16 %v2113, %v2112
        %v2115 = vld [vmem:[#allocation10] sm:$0xf]
        %v2116 = vld [vmem:[#allocation10 + $0x4] sm:$0xf]
        %v2117 = vld [vmem:[#allocation10 + $0x8] sm:$0xf]
        %v2118 = vld [vmem:[#allocation10 + $0xc] sm:$0xf]
        %v2119 = vld [vmem:[#allocation10 + $0x10] sm:$0xf]
        %v2120 = vld [vmem:[#allocation10 + $0x14] sm:$0xf]
        %v2121 = vld [vmem:[#allocation10 + $0x18] sm:$0xf]
        %v2122 = vld [vmem:[#allocation10 + $0x1c] sm:$0xf]
        %v2123 = vld [vmem:[#allocation10 + $0x20] sm:$0xf]
        %v2124 = vld [vmem:[#allocation10 + $0x24] sm:$0xf]
        %v2125 = vld [vmem:[#allocation10 + $0x28] sm:$0xf]
        %v2126 = vld [vmem:[#allocation10 + $0x2c] sm:$0xf]
        %v2127 = vld [vmem:[#allocation10 + $0x30] sm:$0xf]
        %v2128 = vld [vmem:[#allocation10 + $0x34] sm:$0xf]
        %v2129 = vld [vmem:[#allocation10 + $0x38] sm:$0xf]
        %v2130 = vld [vmem:[#allocation10 + $0x3c] sm:$0xf]
        %v2147 = vunpack.c.l.b16 %v2115
        %v2148 = vunpack.c.l.b16 %v2116
        %v2149 = vunpack.c.l.b16 %v2117
        %v2150 = vunpack.c.l.b16 %v2118
        %v2151 = vunpack.c.l.b16 %v2119
        %v2152 = vunpack.c.l.b16 %v2120
        %v2153 = vunpack.c.l.b16 %v2121
        %v2154 = vunpack.c.l.b16 %v2122
        %v2155 = vunpack.c.l.b16 %v2123
        %v2156 = vunpack.c.l.b16 %v2124
        %v2157 = vunpack.c.l.b16 %v2125
        %v2158 = vunpack.c.l.b16 %v2126
        %v2159 = vunpack.c.l.b16 %v2127
        %v2160 = vunpack.c.l.b16 %v2128
        %v2161 = vunpack.c.l.b16 %v2129
        %v2162 = vunpack.c.l.b16 %v2130
        %v2163 = vpack.c.b16 %v2148, %v2147
        %v2164 = vpack.c.b16 %v2150, %v2149
        %v2165 = vpack.c.b16 %v2152, %v2151
        %v2166 = vpack.c.b16 %v2154, %v2153
        %v2167 = vpack.c.b16 %v2156, %v2155
        %v2168 = vpack.c.b16 %v2158, %v2157
        %v2169 = vpack.c.b16 %v2160, %v2159
        %v2170 = vpack.c.b16 %v2162, %v2161
        %2179 = vmatprep.subr.bf16.mxu0 0
        %2180 = vmatpush1.bf16.msra.mxu0 %v2163
        %2181 = vmatprep.subr.bf16.mxu0 0
        %2182 = vmatpush1.bf16.msra.mxu0 %v2164
        %2183 = vmatprep.subr.bf16.mxu0 0
        %2184 = vmatpush1.bf16.msra.mxu0 %v2165
        %2185 = vmatprep.subr.bf16.mxu0 0
        %2186 = vmatpush1.bf16.msra.mxu0 %v2166
        %2187 = vmatprep.subr.bf16.mxu0 0
        %2188 = vmatpush1.bf16.msra.mxu0 %v2167
        %2189 = vmatprep.subr.bf16.mxu0 0
        %2190 = vmatpush1.bf16.msra.mxu0 %v2168
        %2191 = vmatprep.subr.bf16.mxu0 0
        %2192 = vmatpush1.bf16.msra.mxu0 %v2169
        %2193 = vmatprep.subr.bf16.mxu0 0
        %2194 = vmatpush1.bf16.msra.mxu0 %v2170
        %2195 = vmatprep.subr.bf16.mxu0 0
        %2196 = vmatpush1.bf16.msra.mxu0 0
        %2197 = vmatprep.subr.bf16.mxu0 0
        %2198 = vmatpush1.bf16.msra.mxu0 0
        %2199 = vmatprep.subr.bf16.mxu0 0
        %2200 = vmatpush1.bf16.msra.mxu0 0
        %2201 = vmatprep.subr.bf16.mxu0 0
        %2202 = vmatpush1.bf16.msra.mxu0 0
        %2203 = vmatprep.subr.bf16.mxu0 0
        %2204 = vmatpush1.bf16.msra.mxu0 0
        %2205 = vmatprep.subr.bf16.mxu0 0
        %2206 = vmatpush1.bf16.msra.mxu0 0
        %2207 = vmatprep.subr.bf16.mxu0 0
        %2208 = vmatpush1.bf16.msra.mxu0 0
        %2209 = vmatprep.subr.bf16.mxu0 0
        %2210 = vmatpush1.bf16.msra.mxu0 0
        %2211 = vmatprep.mubr.bf16.mxu0 0
        %2212 = vmatmul.mubr.bf16.gmra.mrb[0].mxu0 %v2114
        %v2213 = vpop.f32.mrb[0].mxu0
        %v2214 = vadd.f32 0.0, %v2213
        %v2215 = vpop.f32.mrb[0].mxu0
        %v2216 = vpop.f32.mrb[0].mxu0
        %v2217 = vadd.f32 0.0, %v2216
        %v2218 = vpop.f32.mrb[0].mxu0
        %2219 = vdwg.mxu0
        %v2220 = vadd.f32 %v487, %v2214
        %v2221 = vadd.f32 %v488, %v2217
        %v2222 = vmul.f32 %v2220, %v2220
        %v2223 = vmul.f32 %v2221, %v2221
        %2224 = vadd.xlane.f32.xlu0 %v2222
        %v2225 = vpop.xlane.xlu0 %2224
        %2226 = vadd.xlane.f32.xlu0 %v2223
        %v2227 = vpop.xlane.xlu0 %2226
        %v2228 = vmul.f32 %v2225, %v497
        %v2229 = vmul.f32 %v2227, %v497
        %v2230 = vadd.f32 %v2228, 1e-05
        %v2231 = vadd.f32 %v2229, 1e-05
        %v2232 = vrsqrt.pop %v2230
        %v2233 = vrsqrt.pop %v2231
        %v2234 = vmul.f32 %v2220, %v2232
        %v2235 = vmul.f32 %v2221, %v2233
        %v2237 = vlaneseq
        %v2238 = vshrl.u32 %v2237, 7
        %v2239 = vsub.s32 0, %v2238
        %v2240 = vrot.slane %v486, %v2239
        %v2242 = vmul.f32 %v2234, %v2240
        %v2243 = vmul.f32 %v2235, %v2240
        %v2244 = vpack.c.bf16 %v2243, %v2242
        %v2245 = vld [vmem:[#allocation11] sm:$0xff]
        %v2246 = vld [vmem:[#allocation11 + $0x8] sm:$0xff]
        %v2247 = vld [vmem:[#allocation11 + $0x10] sm:$0xff]
        %v2248 = vld [vmem:[#allocation11 + $0x18] sm:$0xff]
        %v2249 = vld [vmem:[#allocation11 + $0x20] sm:$0xff]
        %v2250 = vld [vmem:[#allocation11 + $0x28] sm:$0xff]
        %v2251 = vld [vmem:[#allocation11 + $0x30] sm:$0xff]
        %v2252 = vld [vmem:[#allocation11 + $0x38] sm:$0xff]
        %v2253 = vld [vmem:[#allocation11 + $0x40] sm:$0xff]
        %v2254 = vld [vmem:[#allocation11 + $0x48] sm:$0xff]
        %v2255 = vld [vmem:[#allocation11 + $0x50] sm:$0xff]
        %v2256 = vld [vmem:[#allocation11 + $0x58] sm:$0xff]
        %v2257 = vld [vmem:[#allocation11 + $0x60] sm:$0xff]
        %v2258 = vld [vmem:[#allocation11 + $0x68] sm:$0xff]
        %v2259 = vld [vmem:[#allocation11 + $0x70] sm:$0xff]
        %v2260 = vld [vmem:[#allocation11 + $0x78] sm:$0xff]
        %v2261 = vld [vmem:[#allocation11 + $0x80] sm:$0xff]
        %v2262 = vld [vmem:[#allocation11 + $0x88] sm:$0xff]
        %v2263 = vld [vmem:[#allocation11 + $0x90] sm:$0xff]
        %v2264 = vld [vmem:[#allocation11 + $0x98] sm:$0xff]
        %v2265 = vld [vmem:[#allocation11 + $0xa0] sm:$0xff]
        %v2266 = vld [vmem:[#allocation11 + $0xa8] sm:$0xff]
        %v2267 = vld [vmem:[#allocation11 + $0xb0] sm:$0xff]
        %v2268 = vld [vmem:[#allocation11 + $0xb8] sm:$0xff]
        %v2269 = vld [vmem:[#allocation11 + $0xc0] sm:$0xff]
        %v2270 = vld [vmem:[#allocation11 + $0xc8] sm:$0xff]
        %v2271 = vld [vmem:[#allocation11 + $0xd0] sm:$0xff]
        %v2272 = vld [vmem:[#allocation11 + $0xd8] sm:$0xff]
        %v2273 = vld [vmem:[#allocation11 + $0xe0] sm:$0xff]
        %v2274 = vld [vmem:[#allocation11 + $0xe8] sm:$0xff]
        %v2275 = vld [vmem:[#allocation11 + $0xf0] sm:$0xff]
        %v2276 = vld [vmem:[#allocation11 + $0xf8] sm:$0xff]
        %v2277 = vld [vmem:[#allocation11 + $0x100] sm:$0xff]
        %v2278 = vld [vmem:[#allocation11 + $0x108] sm:$0xff]
        %v2279 = vld [vmem:[#allocation11 + $0x110] sm:$0xff]
        %v2280 = vld [vmem:[#allocation11 + $0x118] sm:$0xff]
        %v2281 = vld [vmem:[#allocation11 + $0x120] sm:$0xff]
        %v2282 = vld [vmem:[#allocation11 + $0x128] sm:$0xff]
        %v2283 = vld [vmem:[#allocation11 + $0x130] sm:$0xff]
        %v2284 = vld [vmem:[#allocation11 + $0x138] sm:$0xff]
        %v2285 = vld [vmem:[#allocation11 + $0x140] sm:$0xff]
        %v2286 = vld [vmem:[#allocation11 + $0x148] sm:$0xff]
        %v2287 = vld [vmem:[#allocation11 + $0x150] sm:$0xff]
        %v2288 = vld [vmem:[#allocation11 + $0x158] sm:$0xff]
        %v2289 = vld [vmem:[#allocation11 + $0x160] sm:$0xff]
        %v2290 = vld [vmem:[#allocation11 + $0x168] sm:$0xff]
        %v2291 = vld [vmem:[#allocation11 + $0x170] sm:$0xff]
        %v2292 = vld [vmem:[#allocation11 + $0x178] sm:$0xff]
        %v2341 = vunpack.c.l.b16 %v2245
        %v2342 = vunpack.c.h.b16 %v2245
        %v2343 = vunpack.c.l.b16 %v2246
        %v2344 = vunpack.c.h.b16 %v2246
        %v2345 = vunpack.c.l.b16 %v2247
        %v2346 = vunpack.c.h.b16 %v2247
        %v2347 = vunpack.c.l.b16 %v2248
        %v2348 = vunpack.c.h.b16 %v2248
        %v2349 = vunpack.c.l.b16 %v2249
        %v2350 = vunpack.c.h.b16 %v2249
        %v2351 = vunpack.c.l.b16 %v2250
        %v2352 = vunpack.c.h.b16 %v2250
        %v2353 = vunpack.c.l.b16 %v2251
        %v2354 = vunpack.c.h.b16 %v2251
        %v2355 = vunpack.c.l.b16 %v2252
        %v2356 = vunpack.c.h.b16 %v2252
        %v2357 = vunpack.c.l.b16 %v2253
        %v2358 = vunpack.c.h.b16 %v2253
        %v2359 = vunpack.c.l.b16 %v2254
        %v2360 = vunpack.c.h.b16 %v2254
        %v2361 = vunpack.c.l.b16 %v2255
        %v2362 = vunpack.c.h.b16 %v2255
        %v2363 = vunpack.c.l.b16 %v2256
        %v2364 = vunpack.c.h.b16 %v2256
        %v2365 = vunpack.c.l.b16 %v2257
        %v2366 = vunpack.c.h.b16 %v2257
        %v2367 = vunpack.c.l.b16 %v2258
        %v2368 = vunpack.c.h.b16 %v2258
        %v2369 = vunpack.c.l.b16 %v2259
        %v2370 = vunpack.c.h.b16 %v2259
        %v2371 = vunpack.c.l.b16 %v2260
        %v2372 = vunpack.c.h.b16 %v2260
        %v2373 = vunpack.c.l.b16 %v2261
        %v2374 = vunpack.c.h.b16 %v2261
        %v2375 = vunpack.c.l.b16 %v2262
        %v2376 = vunpack.c.h.b16 %v2262
        %v2377 = vunpack.c.l.b16 %v2263
        %v2378 = vunpack.c.h.b16 %v2263
        %v2379 = vunpack.c.l.b16 %v2264
        %v2380 = vunpack.c.h.b16 %v2264
        %v2381 = vunpack.c.l.b16 %v2265
        %v2382 = vunpack.c.h.b16 %v2265
        %v2383 = vunpack.c.l.b16 %v2266
        %v2384 = vunpack.c.h.b16 %v2266
        %v2385 = vunpack.c.l.b16 %v2267
        %v2386 = vunpack.c.h.b16 %v2267
        %v2387 = vunpack.c.l.b16 %v2268
        %v2388 = vunpack.c.h.b16 %v2268
        %v2389 = vunpack.c.l.b16 %v2269
        %v2390 = vunpack.c.h.b16 %v2269
        %v2391 = vunpack.c.l.b16 %v2270
        %v2392 = vunpack.c.h.b16 %v2270
        %v2393 = vunpack.c.l.b16 %v2271
        %v2394 = vunpack.c.h.b16 %v2271
        %v2395 = vunpack.c.l.b16 %v2272
        %v2396 = vunpack.c.h.b16 %v2272
        %v2397 = vunpack.c.l.b16 %v2273
        %v2398 = vunpack.c.h.b16 %v2273
        %v2399 = vunpack.c.l.b16 %v2274
        %v2400 = vunpack.c.h.b16 %v2274
        %v2401 = vunpack.c.l.b16 %v2275
        %v2402 = vunpack.c.h.b16 %v2275
        %v2403 = vunpack.c.l.b16 %v2276
        %v2404 = vunpack.c.h.b16 %v2276
        %v2405 = vunpack.c.l.b16 %v2277
        %v2406 = vunpack.c.h.b16 %v2277
        %v2407 = vunpack.c.l.b16 %v2278
        %v2408 = vunpack.c.h.b16 %v2278
        %v2409 = vunpack.c.l.b16 %v2279
        %v2410 = vunpack.c.h.b16 %v2279
        %v2411 = vunpack.c.l.b16 %v2280
        %v2412 = vunpack.c.h.b16 %v2280
        %v2413 = vunpack.c.l.b16 %v2281
        %v2414 = vunpack.c.h.b16 %v2281
        %v2415 = vunpack.c.l.b16 %v2282
        %v2416 = vunpack.c.h.b16 %v2282
        %v2417 = vunpack.c.l.b16 %v2283
        %v2418 = vunpack.c.h.b16 %v2283
        %v2419 = vunpack.c.l.b16 %v2284
        %v2420 = vunpack.c.h.b16 %v2284
        %v2421 = vunpack.c.l.b16 %v2285
        %v2422 = vunpack.c.h.b16 %v2285
        %v2423 = vunpack.c.l.b16 %v2286
        %v2424 = vunpack.c.h.b16 %v2286
        %v2425 = vunpack.c.l.b16 %v2287
        %v2426 = vunpack.c.h.b16 %v2287
        %v2427 = vunpack.c.l.b16 %v2288
        %v2428 = vunpack.c.h.b16 %v2288
        %v2429 = vunpack.c.l.b16 %v2289
        %v2430 = vunpack.c.h.b16 %v2289
        %v2431 = vunpack.c.l.b16 %v2290
        %v2432 = vunpack.c.h.b16 %v2290
        %v2433 = vunpack.c.l.b16 %v2291
        %v2434 = vunpack.c.h.b16 %v2291
        %v2435 = vunpack.c.l.b16 %v2292
        %v2436 = vunpack.c.h.b16 %v2292
        %v2437 = vpack.c.b16 %v2347, %v2341
        %v2438 = vpack.c.b16 %v2348, %v2342
        %v2439 = vpack.c.b16 %v2349, %v2343
        %v2440 = vpack.c.b16 %v2350, %v2344
        %v2441 = vpack.c.b16 %v2351, %v2345
        %v2442 = vpack.c.b16 %v2352, %v2346
        %v2443 = vpack.c.b16 %v2359, %v2353
        %v2444 = vpack.c.b16 %v2360, %v2354
        %v2445 = vpack.c.b16 %v2361, %v2355
        %v2446 = vpack.c.b16 %v2362, %v2356
        %v2447 = vpack.c.b16 %v2363, %v2357
        %v2448 = vpack.c.b16 %v2364, %v2358
        %v2449 = vpack.c.b16 %v2371, %v2365
        %v2450 = vpack.c.b16 %v2372, %v2366
        %v2451 = vpack.c.b16 %v2373, %v2367
        %v2452 = vpack.c.b16 %v2374, %v2368
        %v2453 = vpack.c.b16 %v2375, %v2369
        %v2454 = vpack.c.b16 %v2376, %v2370
        %v2455 = vpack.c.b16 %v2383, %v2377
        %v2456 = vpack.c.b16 %v2384, %v2378
        %v2457 = vpack.c.b16 %v2385, %v2379
        %v2458 = vpack.c.b16 %v2386, %v2380
        %v2459 = vpack.c.b16 %v2387, %v2381
        %v2460 = vpack.c.b16 %v2388, %v2382
        %v2461 = vpack.c.b16 %v2395, %v2389
        %v2462 = vpack.c.b16 %v2396, %v2390
        %v2463 = vpack.c.b16 %v2397, %v2391
        %v2464 = vpack.c.b16 %v2398, %v2392
        %v2465 = vpack.c.b16 %v2399, %v2393
        %v2466 = vpack.c.b16 %v2400, %v2394
        %v2467 = vpack.c.b16 %v2407, %v2401
        %v2468 = vpack.c.b16 %v2408, %v2402
        %v2469 = vpack.c.b16 %v2409, %v2403
        %v2470 = vpack.c.b16 %v2410, %v2404
        %v2471 = vpack.c.b16 %v2411, %v2405
        %v2472 = vpack.c.b16 %v2412, %v2406
        %v2473 = vpack.c.b16 %v2419, %v2413
        %v2474 = vpack.c.b16 %v2420, %v2414
        %v2475 = vpack.c.b16 %v2421, %v2415
        %v2476 = vpack.c.b16 %v2422, %v2416
        %v2477 = vpack.c.b16 %v2423, %v2417
        %v2478 = vpack.c.b16 %v2424, %v2418
        %v2479 = vpack.c.b16 %v2431, %v2425
        %v2480 = vpack.c.b16 %v2432, %v2426
        %v2481 = vpack.c.b16 %v2433, %v2427
        %v2482 = vpack.c.b16 %v2434, %v2428
        %v2483 = vpack.c.b16 %v2435, %v2429
        %v2484 = vpack.c.b16 %v2436, %v2430
        %2533 = vmatprep.subr.bf16.mxu0 %v2438
        %2534 = vmatpush1.bf16.msra.mxu0 %v2437
        %2535 = vmatprep.subr.bf16.mxu0 %v2444
        %2536 = vmatpush1.bf16.msra.mxu0 %v2443
        %2537 = vmatprep.subr.bf16.mxu0 %v2450
        %2538 = vmatpush1.bf16.msra.mxu0 %v2449
        %2539 = vmatprep.subr.bf16.mxu0 %v2456
        %2540 = vmatpush1.bf16.msra.mxu0 %v2455
        %2541 = vmatprep.subr.bf16.mxu0 %v2462
        %2542 = vmatpush1.bf16.msra.mxu0 %v2461
        %2543 = vmatprep.subr.bf16.mxu0 %v2468
        %2544 = vmatpush1.bf16.msra.mxu0 %v2467
        %2545 = vmatprep.subr.bf16.mxu0 %v2474
        %2546 = vmatpush1.bf16.msra.mxu0 %v2473
        %2547 = vmatprep.subr.bf16.mxu0 %v2480
        %2548 = vmatpush1.bf16.msra.mxu0 %v2479
        %2549 = vmatprep.subr.bf16.mxu0 0
        %2550 = vmatpush1.bf16.msra.mxu0 0
        %2551 = vmatprep.subr.bf16.mxu0 0
        %2552 = vmatpush1.bf16.msra.mxu0 0
        %2553 = vmatprep.subr.bf16.mxu0 0
        %2554 = vmatpush1.bf16.msra.mxu0 0
        %2555 = vmatprep.subr.bf16.mxu0 0
        %2556 = vmatpush1.bf16.msra.mxu0 0
        %2557 = vmatprep.subr.bf16.mxu0 0
        %2558 = vmatpush1.bf16.msra.mxu0 0
        %2559 = vmatprep.subr.bf16.mxu0 0
        %2560 = vmatpush1.bf16.msra.mxu0 0
        %2561 = vmatprep.subr.bf16.mxu0 0
        %2562 = vmatpush1.bf16.msra.mxu0 0
        %2563 = vmatprep.subr.bf16.mxu0 0
        %2564 = vmatpush1.bf16.msra.mxu0 0
        %2565 = vmatprep.mubr.bf16.mxu0 0
        %2566 = vmatmul.mubr.bf16.gmra.mrb[0].mxu0 %v2244
        %v2567 = vpop.f32.mrb[0].mxu0
        %v2568 = vadd.f32 0.0, %v2567
        %v2569 = vpop.f32.mrb[0].mxu0
        %v2570 = vadd.f32 0.0, %v2569
        %v2571 = vpop.f32.mrb[0].mxu0
        %v2572 = vadd.f32 0.0, %v2571
        %v2573 = vpop.f32.mrb[0].mxu0
        %v2574 = vadd.f32 0.0, %v2573
        %2575 = vdwg.mxu0
        %2576 = vmatprep.subr.bf16.mxu0 %v2440
        %2577 = vmatpush1.bf16.msra.mxu0 %v2439
        %2578 = vmatprep.subr.bf16.mxu0 %v2446
        %2579 = vmatpush1.bf16.msra.mxu0 %v2445
        %2580 = vmatprep.subr.bf16.mxu0 %v2452
        %2581 = vmatpush1.bf16.msra.mxu0 %v2451
        %2582 = vmatprep.subr.bf16.mxu0 %v2458
        %2583 = vmatpush1.bf16.msra.mxu0 %v2457
        %2584 = vmatprep.subr.bf16.mxu0 %v2464
        %2585 = vmatpush1.bf16.msra.mxu0 %v2463
        %2586 = vmatprep.subr.bf16.mxu0 %v2470
        %2587 = vmatpush1.bf16.msra.mxu0 %v2469
        %2588 = vmatprep.subr.bf16.mxu0 %v2476
        %2589 = vmatpush1.bf16.msra.mxu0 %v2475
        %2590 = vmatprep.subr.bf16.mxu0 %v2482
        %2591 = vmatpush1.bf16.msra.mxu0 %v2481
        %2592 = vmatprep.subr.bf16.mxu0 0
        %2593 = vmatpush1.bf16.msra.mxu0 0
        %2594 = vmatprep.subr.bf16.mxu0 0
        %2595 = vmatpush1.bf16.msra.mxu0 0
        %2596 = vmatprep.subr.bf16.mxu0 0
        %2597 = vmatpush1.bf16.msra.mxu0 0
        %2598 = vmatprep.subr.bf16.mxu0 0
        %2599 = vmatpush1.bf16.msra.mxu0 0
        %2600 = vmatprep.subr.bf16.mxu0 0
        %2601 = vmatpush1.bf16.msra.mxu0 0
        %2602 = vmatprep.subr.bf16.mxu0 0
        %2603 = vmatpush1.bf16.msra.mxu0 0
        %2604 = vmatprep.subr.bf16.mxu0 0
        %2605 = vmatpush1.bf16.msra.mxu0 0
        %2606 = vmatprep.subr.bf16.mxu0 0
        %2607 = vmatpush1.bf16.msra.mxu0 0
        %2608 = vmatprep.mubr.bf16.mxu0 0
        %2609 = vmatmul.mubr.bf16.gmra.mrb[0].mxu0 %v2244
        %v2610 = vpop.f32.mrb[0].mxu0
        %v2611 = vadd.f32 0.0, %v2610
        %v2612 = vpop.f32.mrb[0].mxu0
        %v2613 = vadd.f32 0.0, %v2612
        %v2614 = vpop.f32.mrb[0].mxu0
        %v2615 = vadd.f32 0.0, %v2614
        %v2616 = vpop.f32.mrb[0].mxu0
        %v2617 = vadd.f32 0.0, %v2616
        %2618 = vdwg.mxu0
        %2619 = vmatprep.subr.bf16.mxu0 %v2442
        %2620 = vmatpush1.bf16.msra.mxu0 %v2441
        %2621 = vmatprep.subr.bf16.mxu0 %v2448
        %2622 = vmatpush1.bf16.msra.mxu0 %v2447
        %2623 = vmatprep.subr.bf16.mxu0 %v2454
        %2624 = vmatpush1.bf16.msra.mxu0 %v2453
        %2625 = vmatprep.subr.bf16.mxu0 %v2460
        %2626 = vmatpush1.bf16.msra.mxu0 %v2459
        %2627 = vmatprep.subr.bf16.mxu0 %v2466
        %2628 = vmatpush1.bf16.msra.mxu0 %v2465
        %2629 = vmatprep.subr.bf16.mxu0 %v2472
        %2630 = vmatpush1.bf16.msra.mxu0 %v2471
        %2631 = vmatprep.subr.bf16.mxu0 %v2478
        %2632 = vmatpush1.bf16.msra.mxu0 %v2477
        %2633 = vmatprep.subr.bf16.mxu0 %v2484
        %2634 = vmatpush1.bf16.msra.mxu0 %v2483
        %2635 = vmatprep.subr.bf16.mxu0 0
        %2636 = vmatpush1.bf16.msra.mxu0 0
        %2637 = vmatprep.subr.bf16.mxu0 0
        %2638 = vmatpush1.bf16.msra.mxu0 0
        %2639 = vmatprep.subr.bf16.mxu0 0
        %2640 = vmatpush1.bf16.msra.mxu0 0
        %2641 = vmatprep.subr.bf16.mxu0 0
        %2642 = vmatpush1.bf16.msra.mxu0 0
        %2643 = vmatprep.subr.bf16.mxu0 0
        %2644 = vmatpush1.bf16.msra.mxu0 0
        %2645 = vmatprep.subr.bf16.mxu0 0
        %2646 = vmatpush1.bf16.msra.mxu0 0
        %2647 = vmatprep.subr.bf16.mxu0 0
        %2648 = vmatpush1.bf16.msra.mxu0 0
        %2649 = vmatprep.subr.bf16.mxu0 0
        %2650 = vmatpush1.bf16.msra.mxu0 0
        %2651 = vmatprep.mubr.bf16.mxu0 0
        %2652 = vmatmul.mubr.bf16.gmra.mrb[0].mxu0 %v2244
        %v2653 = vpop.f32.mrb[0].mxu0
        %v2654 = vadd.f32 0.0, %v2653
        %v2655 = vpop.f32.mrb[0].mxu0
        %v2656 = vadd.f32 0.0, %v2655
        %v2657 = vpop.f32.mrb[0].mxu0
        %v2658 = vadd.f32 0.0, %v2657
        %v2659 = vpop.f32.mrb[0].mxu0
        %v2660 = vadd.f32 0.0, %v2659
        %2661 = vdwg.mxu0
        %v2662 = vxor.u32 %v2568, 2147483648
        %v2663 = vxor.u32 %v2570, 2147483648
        %v2664 = vxor.u32 %v2611, 2147483648
        %v2665 = vxor.u32 %v2572, 2147483648
        %v2666 = vxor.u32 %v2574, 2147483648
        %v2667 = vxor.u32 %v2615, 2147483648
        %v2668 = vmul.f32 %v2662, 1.442695
        %v2669 = vpow.pop %v2668
        %v2670 = vmul.f32 %v2663, 1.442695
        %v2671 = vpow.pop %v2670
        %v2672 = vmul.f32 %v2664, 1.442695
        %v2673 = vpow.pop %v2672
        %v2674 = vmul.f32 %v2665, 1.442695
        %v2675 = vpow.pop %v2674
        %v2676 = vmul.f32 %v2666, 1.442695
        %v2677 = vpow.pop %v2676
        %v2678 = vmul.f32 %v2667, 1.442695
        %v2679 = vpow.pop %v2678
        %v2680 = vadd.f32 %v2669, 1.0
        %v2681 = vadd.f32 %v2671, 1.0
        %v2682 = vadd.f32 %v2673, 1.0
        %v2683 = vadd.f32 %v2675, 1.0
        %v2684 = vadd.f32 %v2677, 1.0
        %v2685 = vadd.f32 %v2679, 1.0
        %v2686 = vrcp.pop %v2680
        %v2687 = vmul.f32 1.0, %v2686
        %v2688 = vrcp.pop %v2681
        %v2689 = vmul.f32 1.0, %v2688
        %v2690 = vrcp.pop %v2682
        %v2691 = vmul.f32 1.0, %v2690
        %v2692 = vrcp.pop %v2683
        %v2693 = vmul.f32 1.0, %v2692
        %v2694 = vrcp.pop %v2684
        %v2695 = vmul.f32 1.0, %v2694
        %v2696 = vrcp.pop %v2685
        %v2697 = vmul.f32 1.0, %v2696
        %v2698 = vmul.f32 %v2568, %v2687
        %v2699 = vmul.f32 %v2570, %v2689
        %v2700 = vmul.f32 %v2611, %v2691
        %v2701 = vmul.f32 %v2572, %v2693
        %v2702 = vmul.f32 %v2574, %v2695
        %v2703 = vmul.f32 %v2615, %v2697
        %v2704 = vmul.f32 %v2698, %v2613
        %v2705 = vmul.f32 %v2699, %v2654
        %v2706 = vmul.f32 %v2700, %v2656
        %v2707 = vmul.f32 %v2701, %v2617
        %v2708 = vmul.f32 %v2702, %v2658
        %v2709 = vmul.f32 %v2703, %v2660
        %v2710 = vpack.c.bf16 %v2707, %v2704
        %v2711 = vpack.c.bf16 %v2708, %v2705
        %v2712 = vpack.c.bf16 %v2709, %v2706
        %v2713 = vld [vmem:[#allocation13] sm:$0xf]
        %v2714 = vld [vmem:[#allocation13 + $0x4] sm:$0xf]
        %v2715 = vld [vmem:[#allocation13 + $0x8] sm:$0xf]
        %v2716 = vld [vmem:[#allocation13 + $0xc] sm:$0xf]
        %v2717 = vld [vmem:[#allocation13 + $0x10] sm:$0xf]
        %v2718 = vld [vmem:[#allocation13 + $0x14] sm:$0xf]
        %v2719 = vld [vmem:[#allocation13 + $0x18] sm:$0xf]
        %v2720 = vld [vmem:[#allocation13 + $0x1c] sm:$0xf]
        %v2721 = vld [vmem:[#allocation13 + $0x20] sm:$0xf]
        %v2722 = vld [vmem:[#allocation13 + $0x24] sm:$0xf]
        %v2723 = vld [vmem:[#allocation13 + $0x28] sm:$0xf]
        %v2724 = vld [vmem:[#allocation13 + $0x2c] sm:$0xf]
        %v2725 = vld [vmem:[#allocation13 + $0x30] sm:$0xf]
        %v2726 = vld [vmem:[#allocation13 + $0x34] sm:$0xf]
        %v2727 = vld [vmem:[#allocation13 + $0x38] sm:$0xf]
        %v2728 = vld [vmem:[#allocation13 + $0x3c] sm:$0xf]
        %v2729 = vld [vmem:[#allocation13 + $0x40] sm:$0xf]
        %v2730 = vld [vmem:[#allocation13 + $0x44] sm:$0xf]
        %v2731 = vld [vmem:[#allocation13 + $0x48] sm:$0xf]
        %v2732 = vld [vmem:[#allocation13 + $0x4c] sm:$0xf]
        %v2733 = vld [vmem:[#allocation13 + $0x50] sm:$0xf]
        %v2734 = vld [vmem:[#allocation13 + $0x54] sm:$0xf]
        %v2735 = vld [vmem:[#allocation13 + $0x58] sm:$0xf]
        %v2736 = vld [vmem:[#allocation13 + $0x5c] sm:$0xf]
        %v2737 = vld [vmem:[#allocation13 + $0x60] sm:$0xf]
        %v2738 = vld [vmem:[#allocation13 + $0x64] sm:$0xf]
        %v2739 = vld [vmem:[#allocation13 + $0x68] sm:$0xf]
        %v2740 = vld [vmem:[#allocation13 + $0x6c] sm:$0xf]
        %v2741 = vld [vmem:[#allocation13 + $0x70] sm:$0xf]
        %v2742 = vld [vmem:[#allocation13 + $0x74] sm:$0xf]
        %v2743 = vld [vmem:[#allocation13 + $0x78] sm:$0xf]
        %v2744 = vld [vmem:[#allocation13 + $0x7c] sm:$0xf]
        %v2745 = vld [vmem:[#allocation13 + $0x80] sm:$0xf]
        %v2746 = vld [vmem:[#allocation13 + $0x84] sm:$0xf]
        %v2747 = vld [vmem:[#allocation13 + $0x88] sm:$0xf]
        %v2748 = vld [vmem:[#allocation13 + $0x8c] sm:$0xf]
        %v2749 = vld [vmem:[#allocation13 + $0x90] sm:$0xf]
        %v2750 = vld [vmem:[#allocation13 + $0x94] sm:$0xf]
        %v2751 = vld [vmem:[#allocation13 + $0x98] sm:$0xf]
        %v2752 = vld [vmem:[#allocation13 + $0x9c] sm:$0xf]
        %v2753 = vld [vmem:[#allocation13 + $0xa0] sm:$0xf]
        %v2754 = vld [vmem:[#allocation13 + $0xa4] sm:$0xf]
        %v2755 = vld [vmem:[#allocation13 + $0xa8] sm:$0xf]
        %v2756 = vld [vmem:[#allocation13 + $0xac] sm:$0xf]
        %v2757 = vld [vmem:[#allocation13 + $0xb0] sm:$0xf]
        %v2758 = vld [vmem:[#allocation13 + $0xb4] sm:$0xf]
        %v2759 = vld [vmem:[#allocation13 + $0xb8] sm:$0xf]
        %v2760 = vld [vmem:[#allocation13 + $0xbc] sm:$0xf]
        %v2809 = vunpack.c.l.b16 %v2713
        %v2810 = vunpack.c.l.b16 %v2714
        %v2811 = vunpack.c.l.b16 %v2715
        %v2812 = vunpack.c.l.b16 %v2716
        %v2813 = vunpack.c.l.b16 %v2717
        %v2814 = vunpack.c.l.b16 %v2718
        %v2815 = vunpack.c.l.b16 %v2719
        %v2816 = vunpack.c.l.b16 %v2720
        %v2817 = vunpack.c.l.b16 %v2721
        %v2818 = vunpack.c.l.b16 %v2722
        %v2819 = vunpack.c.l.b16 %v2723
        %v2820 = vunpack.c.l.b16 %v2724
        %v2821 = vunpack.c.l.b16 %v2725
        %v2822 = vunpack.c.l.b16 %v2726
        %v2823 = vunpack.c.l.b16 %v2727
        %v2824 = vunpack.c.l.b16 %v2728
        %v2825 = vunpack.c.l.b16 %v2729
        %v2826 = vunpack.c.l.b16 %v2730
        %v2827 = vunpack.c.l.b16 %v2731
        %v2828 = vunpack.c.l.b16 %v2732
        %v2829 = vunpack.c.l.b16 %v2733
        %v2830 = vunpack.c.l.b16 %v2734
        %v2831 = vunpack.c.l.b16 %v2735
        %v2832 = vunpack.c.l.b16 %v2736
        %v2833 = vunpack.c.l.b16 %v2737
        %v2834 = vunpack.c.l.b16 %v2738
        %v2835 = vunpack.c.l.b16 %v2739
        %v2836 = vunpack.c.l.b16 %v2740
        %v2837 = vunpack.c.l.b16 %v2741
        %v2838 = vunpack.c.l.b16 %v2742
        %v2839 = vunpack.c.l.b16 %v2743
        %v2840 = vunpack.c.l.b16 %v2744
        %v2841 = vunpack.c.l.b16 %v2745
        %v2842 = vunpack.c.l.b16 %v2746
        %v2843 = vunpack.c.l.b16 %v2747
        %v2844 = vunpack.c.l.b16 %v2748
        %v2845 = vunpack.c.l.b16 %v2749
        %v2846 = vunpack.c.l.b16 %v2750
        %v2847 = vunpack.c.l.b16 %v2751
        %v2848 = vunpack.c.l.b16 %v2752
        %v2849 = vunpack.c.l.b16 %v2753
        %v2850 = vunpack.c.l.b16 %v2754
        %v2851 = vunpack.c.l.b16 %v2755
        %v2852 = vunpack.c.l.b16 %v2756
        %v2853 = vunpack.c.l.b16 %v2757
        %v2854 = vunpack.c.l.b16 %v2758
        %v2855 = vunpack.c.l.b16 %v2759
        %v2856 = vunpack.c.l.b16 %v2760
        %v2857 = vpack.c.b16 %v2810, %v2809
        %v2858 = vpack.c.b16 %v2812, %v2811
        %v2859 = vpack.c.b16 %v2814, %v2813
        %v2860 = vpack.c.b16 %v2816, %v2815
        %v2861 = vpack.c.b16 %v2818, %v2817
        %v2862 = vpack.c.b16 %v2820, %v2819
        %v2863 = vpack.c.b16 %v2822, %v2821
        %v2864 = vpack.c.b16 %v2824, %v2823
        %v2865 = vpack.c.b16 %v2826, %v2825
        %v2866 = vpack.c.b16 %v2828, %v2827
        %v2867 = vpack.c.b16 %v2830, %v2829
        %v2868 = vpack.c.b16 %v2832, %v2831
        %v2869 = vpack.c.b16 %v2834, %v2833
        %v2870 = vpack.c.b16 %v2836, %v2835
        %v2871 = vpack.c.b16 %v2838, %v2837
        %v2872 = vpack.c.b16 %v2840, %v2839
        %v2873 = vpack.c.b16 %v2842, %v2841
        %v2874 = vpack.c.b16 %v2844, %v2843
        %v2875 = vpack.c.b16 %v2846, %v2845
        %v2876 = vpack.c.b16 %v2848, %v2847
        %v2877 = vpack.c.b16 %v2850, %v2849
        %v2878 = vpack.c.b16 %v2852, %v2851
        %v2879 = vpack.c.b16 %v2854, %v2853
        %v2880 = vpack.c.b16 %v2856, %v2855
        %2905 = vmatprep.subr.bf16.mxu0 0
        %2906 = vmatpush1.bf16.msra.mxu0 %v2857
        %2907 = vmatprep.subr.bf16.mxu0 0
        %2908 = vmatpush1.bf16.msra.mxu0 %v2858
        %2909 = vmatprep.subr.bf16.mxu0 0
        %2910 = vmatpush1.bf16.msra.mxu0 %v2859
        %2911 = vmatprep.subr.bf16.mxu0 0
        %2912 = vmatpush1.bf16.msra.mxu0 %v2860
        %2913 = vmatprep.subr.bf16.mxu0 0
        %2914 = vmatpush1.bf16.msra.mxu0 %v2861
        %2915 = vmatprep.subr.bf16.mxu0 0
        %2916 = vmatpush1.bf16.msra.mxu0 %v2862
        %2917 = vmatprep.subr.bf16.mxu0 0
        %2918 = vmatpush1.bf16.msra.mxu0 %v2863
        %2919 = vmatprep.subr.bf16.mxu0 0
        %2920 = vmatpush1.bf16.msra.mxu0 %v2864
        %2921 = vmatprep.subr.bf16.mxu0 0
        %2922 = vmatpush1.bf16.msra.mxu0 %v2865
        %2923 = vmatprep.subr.bf16.mxu0 0
        %2924 = vmatpush1.bf16.msra.mxu0 %v2866
        %2925 = vmatprep.subr.bf16.mxu0 0
        %2926 = vmatpush1.bf16.msra.mxu0 %v2867
        %2927 = vmatprep.subr.bf16.mxu0 0
        %2928 = vmatpush1.bf16.msra.mxu0 %v2868
        %2929 = vmatprep.subr.bf16.mxu0 0
        %2930 = vmatpush1.bf16.msra.mxu0 %v2869
        %2931 = vmatprep.subr.bf16.mxu0 0
        %2932 = vmatpush1.bf16.msra.mxu0 %v2870
        %2933 = vmatprep.subr.bf16.mxu0 0
        %2934 = vmatpush1.bf16.msra.mxu0 %v2871
        %2935 = vmatprep.subr.bf16.mxu0 0
        %2936 = vmatpush1.bf16.msra.mxu0 %v2872
        %2937 = vmatprep.mubr.bf16.mxu0 %v2711
        %2938 = vmatmul.mubr.bf16.gmra.mrb[0].mxu0 %v2710
        %v2939 = vpop.f32.mrb[0].mxu0
        %v2940 = vadd.f32 0.0, %v2939
        %v2941 = vpop.f32.mrb[0].mxu0
        %v2942 = vpop.f32.mrb[0].mxu0
        %v2943 = vadd.f32 0.0, %v2942
        %v2944 = vpop.f32.mrb[0].mxu0
        %2945 = vdwg.mxu0
        %2946 = vmatprep.subr.bf16.mxu0 0
        %2947 = vmatpush1.bf16.msra.mxu0 %v2873
        %2948 = vmatprep.subr.bf16.mxu0 0
        %2949 = vmatpush1.bf16.msra.mxu0 %v2874
        %2950 = vmatprep.subr.bf16.mxu0 0
        %2951 = vmatpush1.bf16.msra.mxu0 %v2875
        %2952 = vmatprep.subr.bf16.mxu0 0
        %2953 = vmatpush1.bf16.msra.mxu0 %v2876
        %2954 = vmatprep.subr.bf16.mxu0 0
        %2955 = vmatpush1.bf16.msra.mxu0 %v2877
        %2956 = vmatprep.subr.bf16.mxu0 0
        %2957 = vmatpush1.bf16.msra.mxu0 %v2878
        %2958 = vmatprep.subr.bf16.mxu0 0
        %2959 = vmatpush1.bf16.msra.mxu0 %v2879
        %2960 = vmatprep.subr.bf16.mxu0 0
        %2961 = vmatpush1.bf16.msra.mxu0 %v2880
        %2962 = vmatprep.subr.bf16.mxu0 0
        %2963 = vmatpush1.bf16.msra.mxu0 0
        %2964 = vmatprep.subr.bf16.mxu0 0
        %2965 = vmatpush1.bf16.msra.mxu0 0
        %2966 = vmatprep.subr.bf16.mxu0 0
        %2967 = vmatpush1.bf16.msra.mxu0 0
        %2968 = vmatprep.subr.bf16.mxu0 0
        %2969 = vmatpush1.bf16.msra.mxu0 0
        %2970 = vmatprep.subr.bf16.mxu0 0
        %2971 = vmatpush1.bf16.msra.mxu0 0
        %2972 = vmatprep.subr.bf16.mxu0 0
        %2973 = vmatpush1.bf16.msra.mxu0 0
        %2974 = vmatprep.subr.bf16.mxu0 0
        %2975 = vmatpush1.bf16.msra.mxu0 0
        %2976 = vmatprep.subr.bf16.mxu0 0
        %2977 = vmatpush1.bf16.msra.mxu0 0
        %2978 = vmatprep.mubr.bf16.mxu0 0
        %2979 = vmatmul.mubr.bf16.gmra.mrb[0].mxu0 %v2712
        %v2980 = vpop.f32.mrb[0].mxu0
        %v2981 = vadd.f32 %v2940, %v2980
        %v2982 = vpop.f32.mrb[0].mxu0
        %v2983 = vpop.f32.mrb[0].mxu0
        %v2984 = vadd.f32 %v2943, %v2983
        %v2985 = vpop.f32.mrb[0].mxu0
        %2986 = vdwg.mxu0
        %v2987 = vadd.f32 %v2220, %v2981
        %v2988 = vadd.f32 %v2221, %v2984
        %2989 = vst [vmem:[%s480] sm:$0xff] %v2987
        %2990 = vst [vmem:[%s480 + $0x8] sm:$0xff] %v2988
        %s2991 = sand.u32 %s254, 1
        %s2992 = scalar_lea.sflag [#allocation4], %s2991
        %s2993 = sand.u32 %s254, 1
        %s2994 = smul.addr %s2993, 16
        %s2995 = scalar_lea.vmem [#allocation14], %s2994
        // Predicated region
        $region85: #{tpu_custom_call.1} parent=55 // pred_check
          %p2996 = pneg %p264
        $region86: #{tpu_custom_call.1} parent=55 // pred_check_branch
          %2998 = sbr.rel (%p2996) target = $region88
        $region87: #{tpu_custom_call.1} parent=55 // pred_region
          %s2999 = smul.u32 2, %s36
          %s3001 = ssub.s32 256, 256
          %3002 = vsyncadd %s2992, %s3001
          %s3003 = smul.addr %s35, 2
          %s3004 = sadd.s32 %s2999, %s3003
          %s3005 = smul.addr %s3004, 128
          %s3006 = scalar_lea.hbm %s9, %s3005
          %s3007 = sshll.u32 %s2995, 4
          %s3008 = int_to_ptr.vmem [resolvable:$true] %s3007
          %3013 = dma.vmem_to_hbm [thread:$0]  %s3008, 256, %s3006, %s2992, 128, 128, 8
        $region88: #{tpu_custom_call.1} parent=55 // pred_fallthru
          _
      $region56: #{tpu_custom_call.1} parent=5 // pred_fallthru
        _
      %p3014 = scmp.le.s32.totalorder 2, %s26
      // Predicated region
      $region89: #{tpu_custom_call.1} parent=5 // pred_check
        %p3015 = pneg %p3014
      $region90: #{tpu_custom_call.1} parent=5 // pred_check_branch
        %3017 = sbr.rel (%p3015) target = $region92
      $region91: #{tpu_custom_call.1} parent=5 // pred_region
        %s3018 = ssub.s32 %s26, 2
        // Predicated region
        $region93: #{tpu_custom_call.1} parent=91 // pred_check
          %p3019 = pneg %p270
        $region94: #{tpu_custom_call.1} parent=91 // pred_check_branch
          %3021 = sbr.rel (%p3019) target = $region96
        $region95: #{tpu_custom_call.1} parent=91 // pred_region
          %s3022 = sand.u32 %s255, 1
          %s3023 = scalar_lea.sflag [#allocation4], %s3022
          %s3024 = sand.u32 %s255, 1
          %s3025 = smul.addr %s3024, 16
          %s3026 = scalar_lea.vmem [#allocation14], %s3025
          %3027 = dma.done %s3023, 256
        $region96: #{tpu_custom_call.1} parent=91 // pred_fallthru
          _
      $region92: #{tpu_custom_call.1} parent=5 // pred_fallthru
        _
    $region6: #{tpu_custom_call.1} parent=1 // loop_footer
      %s30 = sadd.s32 1, %s26
    $region7: #{tpu_custom_call.1} parent=1 // loop_footer_branch
      %25 = sbr.rel target = $region3
    $region8: #{tpu_custom_call.1} parent=1 // loop_exit
      _
    %3028 = vsyncpa [#allocation3], 1
    %s3029 = scalar_lea.sflag [#allocation3], 1
    %3030 = vsyncpa %s3029, 1
    %3031 = vsyncpa [#allocation6], 1
    %s3032 = scalar_lea.sflag [#allocation6], 1
    %3033 = vsyncpa %s3032, 1
    %3034 = vsyncpa [#allocation9], 1
    %3035 = vsyncpa [#allocation12], 1
    %3036 = vsyncpa [#allocation4], 1
    %s3037 = scalar_lea.sflag [#allocation4], 1
    %3038 = vsyncpa %s3037, 1

</llo_original>
